<compile_context>
chip_gen: v5e
topology: v5e:2x2
jax: 0.10.0
libtpu: 0.0.40
codegen_flags: <defaults>
</compile_context>

<pallas_src>
import functools

import jax
import jax.numpy as jnp
import numpy as np
from jax.experimental import pallas as pl
from jax.experimental.pallas import tpu as pltpu


def snn_kernel(x_ref, w1_ref, v1_ref, w2_ref,
               mem_rec_ref, spk_rec_ref, out_rec_ref,
               syn_s, mem_s, spk_s, flt_s, outr_s,
               *, alpha, beta, t_blk):
    tb = pl.program_id(1)  # time-block index (innermost, sequential)

    # Zero the carried state at the start of every batch tile's time sweep.
    @pl.when(tb == 0)
    def _():
        syn_s[...] = jnp.zeros_like(syn_s)
        mem_s[...] = jnp.zeros_like(mem_s)
        spk_s[...] = jnp.zeros_like(spk_s)
        flt_s[...] = jnp.zeros_like(flt_s)
        outr_s[...] = jnp.zeros_like(outr_s)

    w1 = w1_ref[...]            # (I, H)
    v1 = v1_ref[...]            # (H, H)
    w2 = w2_ref[...]            # (H, O)

    x_blk = x_ref[...]          # (b_blk, t_blk, I)
    b_blk = x_blk.shape[0]
    n_in = x_blk.shape[2]
    n_hid = w1.shape[1]
    n_out = w2.shape[1]

    # Input projection for the whole time block in one matmul (no time dependence).
    h1_x = jnp.dot(x_blk.reshape(b_blk * t_blk, n_in), w1,
                   preferred_element_type=jnp.float32)
    h1_x = h1_x.reshape(b_blk, t_blk, n_hid)

    syn = syn_s[...]
    mem = mem_s[...]
    spk = spk_s[...]

    # Sequential LIF recurrence over the block (fully unrolled, static indices).
    for i in range(t_blk):
        h1 = h1_x[:, i, :] + jnp.dot(spk, v1, preferred_element_type=jnp.float32)
        new_spk = (mem - 1.0 > 0.0).astype(jnp.float32)   # SurrGradSpike forward
        # Records: pre-update membrane, new spike (matches the torch loop).
        mem_rec_ref[:, i:i + 1, :] = mem[:, None, :]
        spk_rec_ref[:, i:i + 1, :] = new_spk[:, None, :]
        new_syn = alpha * syn + h1
        new_mem = (beta * mem + syn) * (1.0 - new_spk)
        syn, mem, spk = new_syn, new_mem, new_spk

    syn_s[...] = syn
    mem_s[...] = mem
    spk_s[...] = spk

    # Readout: one batched matmul over the block's spikes, then the short
    # sequential leaky integrator.
    spk_blk = spk_rec_ref[...]                               # (b_blk, t_blk, H)
    h2 = jnp.dot(spk_blk.reshape(b_blk * t_blk, n_hid), w2,
                 preferred_element_type=jnp.float32).reshape(b_blk, t_blk, n_out)

    flt = flt_s[...]
    outr = outr_s[...]
    for i in range(t_blk):
        new_flt = alpha * flt + h2[:, i, :]
        new_out = beta * outr + flt
        out_rec_ref[:, i:i + 1, :] = new_out[:, None, :]     # out_rec[t+1]
        flt, outr = new_flt, new_out
    flt_s[...] = flt
    outr_s[...] = outr


def snn_forward(inputs, w1, v1, w2, *, alpha, beta, t_blk=8, b_blk=None):
    """inputs: (B, T, nb_inputs) float32 (PyTorch convention)."""
    B, T, I = inputs.shape
    H = w1.shape[1]
    O = w2.shape[1]
    if b_blk is None:
        b_blk = B
    assert B % b_blk == 0

    x = inputs.astype(jnp.float32)
    T_pad = ((T + t_blk - 1) // t_blk) * t_blk
    if T_pad != T:
        x = jnp.pad(x, ((0, 0), (0, T_pad - T), (0, 0)))

    kernel = functools.partial(snn_kernel, alpha=float(alpha), beta=float(beta),
                               t_blk=t_blk)

    mem_rec, spk_rec, out_tail = pl.pallas_call(
        kernel,
        out_shape=(jax.ShapeDtypeStruct((B, T_pad, H), jnp.float32),
                   jax.ShapeDtypeStruct((B, T_pad, H), jnp.float32),
                   jax.ShapeDtypeStruct((B, T_pad, O), jnp.float32)),
        grid_spec=pltpu.PrefetchScalarGridSpec(
            num_scalar_prefetch=0,
            grid=(B // b_blk, T_pad // t_blk),
            in_specs=[
                pl.BlockSpec((b_blk, t_blk, I), lambda b, t: (b, t, 0)),  # x block
                pl.BlockSpec((I, H), lambda b, t: (0, 0)),                # w1 (resident)
                pl.BlockSpec((H, H), lambda b, t: (0, 0)),                # v1 (resident)
                pl.BlockSpec((H, O), lambda b, t: (0, 0)),                # w2 (resident)
            ],
            out_specs=[
                pl.BlockSpec((b_blk, t_blk, H), lambda b, t: (b, t, 0)),  # mem_rec
                pl.BlockSpec((b_blk, t_blk, H), lambda b, t: (b, t, 0)),  # spk_rec
                pl.BlockSpec((b_blk, t_blk, O), lambda b, t: (b, t, 0)),  # out_rec[1:]
            ],
            scratch_shapes=[
                pltpu.VMEM((b_blk, H), jnp.float32),   # syn
                pltpu.VMEM((b_blk, H), jnp.float32),   # mem
                pltpu.VMEM((b_blk, H), jnp.float32),   # spk (previous step)
                pltpu.VMEM((b_blk, O), jnp.float32),   # flt
                pltpu.VMEM((b_blk, O), jnp.float32),   # readout out
            ],
        ),
        compiler_params=pltpu.CompilerParams(
            dimension_semantics=("parallel", "arbitrary")),  # batch || , time sequential
    )(x, w1, v1, w2)

    if T_pad != T:
        mem_rec = mem_rec[:, :T]
        spk_rec = spk_rec[:, :T]
        out_tail = out_tail[:, :T]

    # Prepend the initial zero readout row -> (B, T+1, O), matching the torch module.
    out_rec = jnp.concatenate(
        [jnp.zeros((B, 1, O), jnp.float32), out_tail], axis=1)
    return out_rec, [mem_rec, spk_rec]


def snn_reference(inputs, w1, v1, w2, *, alpha, beta):
    """Pure-JAX port of SNN.forward for verification (default matmul precision)."""
    B, T, I = inputs.shape
    H = w1.shape[1]
    O = w2.shape[1]
    syn = jnp.zeros((B, H), jnp.float32)
    mem = jnp.zeros((B, H), jnp.float32)
    out = jnp.zeros((B, H), jnp.float32)
    h1_from_input = jnp.einsum('abc,cd->abd', inputs, w1)
    mem_rec, spk_rec = [], []
    for t in range(T):
        h1 = h1_from_input[:, t] + jnp.einsum('ab,bc->ac', out, v1)
        mthr = mem - 1.0
        out = (mthr > 0.0).astype(jnp.float32)
        rst = out
        new_syn = alpha * syn + h1
        new_mem = (beta * mem + syn) * (1.0 - rst)
        mem_rec.append(mem)
        spk_rec.append(out)
        mem, syn = new_mem, new_syn
    mem_rec = jnp.stack(mem_rec, axis=1)
    spk_rec = jnp.stack(spk_rec, axis=1)
    h2 = jnp.einsum('abc,cd->abd', spk_rec, w2)
    flt = jnp.zeros((B, O), jnp.float32)
    outr = jnp.zeros((B, O), jnp.float32)
    out_rec = [outr]
    for t in range(T):
        new_flt = alpha * flt + h2[:, t]
        new_out = beta * outr + flt
        flt, outr = new_flt, new_out
        out_rec.append(outr)
    return jnp.stack(out_rec, axis=1), [mem_rec, spk_rec]


if __name__ == "__main__":
    # Small shapes consistent with the module's constructor.
    nb_inputs, nb_hidden, nb_outputs = 16, 32, 8
    batch_size, nb_steps = 2, 16
    time_step, tau_mem, tau_syn = 0.01, 0.1, 0.05
    alpha = float(np.exp(-time_step / tau_syn))
    beta = float(np.exp(-time_step / tau_mem))

    key = jax.random.PRNGKey(0)
    k_w1, k_w2, k_v1, k_x = jax.random.split(key, 4)
    weight_scale = 0.2
    w1 = (weight_scale / np.sqrt(nb_inputs)) * jax.random.normal(
        k_w1, (nb_inputs, nb_hidden), jnp.float32)
    w2 = (weight_scale / np.sqrt(nb_hidden)) * jax.random.normal(
        k_w2, (nb_hidden, nb_outputs), jnp.float32)
    v1 = (weight_scale / np.sqrt(nb_hidden)) * jax.random.normal(
        k_v1, (nb_hidden, nb_hidden), jnp.float32)

    # Input spike-train-like drive, scaled so some hidden units actually spike.
    inputs = 20.0 * (jax.random.uniform(
        k_x, (batch_size, nb_steps, nb_inputs), jnp.float32) < 0.3).astype(jnp.float32)

    # b_blk=1 exercises the batch-parallel grid axis (2 independent batch tiles);
    # t_blk=8 exercises state carry across time blocks.
    out_rec, (mem_rec, spk_rec) = snn_forward(
        inputs, w1, v1, w2, alpha=alpha, beta=beta, t_blk=8, b_blk=1)
    jax.block_until_ready((out_rec, mem_rec, spk_rec))

    out_ref, (mem_ref, spk_ref) = snn_reference(inputs, w1, v1, w2, alpha=alpha, beta=beta)
    np.testing.assert_allclose(np.asarray(mem_rec), np.asarray(mem_ref), rtol=1e-4, atol=1e-4)
    np.testing.assert_allclose(np.asarray(spk_rec), np.asarray(spk_ref), rtol=0, atol=1e-6)
    np.testing.assert_allclose(np.asarray(out_rec), np.asarray(out_ref), rtol=1e-4, atol=1e-4)

    # TODO(synk): SurrGradSpike's surrogate backward (fast-sigmoid gradient) is not
    # implemented; this kernel covers the forward pass only.
    print("KERNEL_OK")
</pallas_src>

<mosaic_0001>
module attributes {stable_mosaic.version = 11 : i64} {
  func.func @snn_kernel(%arg0: i32, %arg1: i32, %arg2: memref<1x8x16xf32, #tpu.memory_space<vmem>>, %arg3: memref<16x32xf32, #tpu.memory_space<vmem>>, %arg4: memref<32x32xf32, #tpu.memory_space<vmem>>, %arg5: memref<32x8xf32, #tpu.memory_space<vmem>>, %arg6: memref<1x8x32xf32, #tpu.memory_space<vmem>>, %arg7: memref<1x8x32xf32, #tpu.memory_space<vmem>>, %arg8: memref<1x8x8xf32, #tpu.memory_space<vmem>>, %arg9: memref<1x32xf32, #tpu.memory_space<vmem>>, %arg10: memref<1x32xf32, #tpu.memory_space<vmem>>, %arg11: memref<1x32xf32, #tpu.memory_space<vmem>>, %arg12: memref<1x8xf32, #tpu.memory_space<vmem>>, %arg13: memref<1x8xf32, #tpu.memory_space<vmem>>) attributes {dimension_semantics = [#tpu.dimension_semantics<parallel>, #tpu.dimension_semantics<arbitrary>], iteration_bounds = array<i64: 2, 2>, scalar_prefetch = 0 : i64, scratch_operands = 5 : i64, tpu.core_type = #tpu.core_type<tc>, window_params = [{transform_indices = @transform_0, window_bounds = array<i64: 1, 8, 16>}, {pipeline_mode = #tpu.pipeline_mode<synchronous>, transform_indices = @transform_1, window_bounds = array<i64: 16, 32>}, {pipeline_mode = #tpu.pipeline_mode<synchronous>, transform_indices = @transform_2, window_bounds = array<i64: 32, 32>}, {pipeline_mode = #tpu.pipeline_mode<synchronous>, transform_indices = @transform_3, window_bounds = array<i64: 32, 8>}, {transform_indices = @transform_4, window_bounds = array<i64: 1, 8, 32>}, {transform_indices = @transform_5, window_bounds = array<i64: 1, 8, 32>}, {transform_indices = @transform_6, window_bounds = array<i64: 1, 8, 8>}]} {
    %c0_i32 = arith.constant 0 : i32
    %0 = arith.cmpi eq, %arg1, %c0_i32 : i32
    %1 = arith.extui %0 : i1 to i32
    %c0_i32_0 = arith.constant 0 : i32
    %2 = arith.cmpi ne, %1, %c0_i32_0 : i32
    scf.if %2 {
      %cst_162 = arith.constant 0.000000e+00 : f32
      %288 = vector.broadcast %cst_162 : f32 to vector<1x32xf32>
      %c0_163 = arith.constant 0 : index
      %c0_164 = arith.constant 0 : index
      %289 = vector.load %arg9[%c0_163, %c0_164] : memref<1x32xf32, #tpu.memory_space<vmem>>, vector<1x32xf32>
      tpu.vector_store %arg9[%c0_163, %c0_164], %288 {strides = array<i32>} : memref<1x32xf32, #tpu.memory_space<vmem>>, vector<1x32xf32>,
      %cst_165 = arith.constant 0.000000e+00 : f32
      %290 = vector.broadcast %cst_165 : f32 to vector<1x32xf32>
      %c0_166 = arith.constant 0 : index
      %c0_167 = arith.constant 0 : index
      %291 = vector.load %arg10[%c0_166, %c0_167] : memref<1x32xf32, #tpu.memory_space<vmem>>, vector<1x32xf32>
      tpu.vector_store %arg10[%c0_166, %c0_167], %290 {strides = array<i32>} : memref<1x32xf32, #tpu.memory_space<vmem>>, vector<1x32xf32>,
      %cst_168 = arith.constant 0.000000e+00 : f32
      %292 = vector.broadcast %cst_168 : f32 to vector<1x32xf32>
      %c0_169 = arith.constant 0 : index
      %c0_170 = arith.constant 0 : index
      %293 = vector.load %arg11[%c0_169, %c0_170] : memref<1x32xf32, #tpu.memory_space<vmem>>, vector<1x32xf32>
      tpu.vector_store %arg11[%c0_169, %c0_170], %292 {strides = array<i32>} : memref<1x32xf32, #tpu.memory_space<vmem>>, vector<1x32xf32>,
      %cst_171 = arith.constant 0.000000e+00 : f32
      %294 = vector.broadcast %cst_171 : f32 to vector<1x8xf32>
      %c0_172 = arith.constant 0 : index
      %c0_173 = arith.constant 0 : index
      %295 = vector.load %arg12[%c0_172, %c0_173] : memref<1x8xf32, #tpu.memory_space<vmem>>, vector<1x8xf32>
      tpu.vector_store %arg12[%c0_172, %c0_173], %294 {strides = array<i32>} : memref<1x8xf32, #tpu.memory_space<vmem>>, vector<1x8xf32>,
      %cst_174 = arith.constant 0.000000e+00 : f32
      %296 = vector.broadcast %cst_174 : f32 to vector<1x8xf32>
      %c0_175 = arith.constant 0 : index
      %c0_176 = arith.constant 0 : index
      %297 = vector.load %arg13[%c0_175, %c0_176] : memref<1x8xf32, #tpu.memory_space<vmem>>, vector<1x8xf32>
      tpu.vector_store %arg13[%c0_175, %c0_176], %296 {strides = array<i32>} : memref<1x8xf32, #tpu.memory_space<vmem>>, vector<1x8xf32>,
    } else {
    }
    %c0 = arith.constant 0 : index
    %c0_1 = arith.constant 0 : index
    %3 = vector.load %arg3[%c0, %c0_1] : memref<16x32xf32, #tpu.memory_space<vmem>>, vector<16x32xf32>
    %c0_2 = arith.constant 0 : index
    %c0_3 = arith.constant 0 : index
    %4 = vector.load %arg4[%c0_2, %c0_3] : memref<32x32xf32, #tpu.memory_space<vmem>>, vector<32x32xf32>
    %c0_4 = arith.constant 0 : index
    %c0_5 = arith.constant 0 : index
    %5 = vector.load %arg5[%c0_4, %c0_5] : memref<32x8xf32, #tpu.memory_space<vmem>>, vector<32x8xf32>
    %c0_6 = arith.constant 0 : index
    %c0_7 = arith.constant 0 : index
    %c0_8 = arith.constant 0 : index
    %6 = vector.load %arg2[%c0_6, %c0_7, %c0_8] : memref<1x8x16xf32, #tpu.memory_space<vmem>>, vector<1x8x16xf32>
    %7 = vector.shape_cast %6 : vector<1x8x16xf32> to vector<8x16xf32>
    %cst = arith.constant dense<0.000000e+00> : vector<8x32xf32>
    %8 = tpu.matmul %7, %3, %cst {dimension_numbers = #tpu.dot_dimension_numbers<[1], [0], [0], [1], [0, 0, 1, 1], [], []>} : vector<8x16xf32>, vector<16x32xf32>, vector<8x32xf32> -> vector<8x32xf32>
    %9 = vector.shape_cast %8 : vector<8x32xf32> to vector<1x8x32xf32>
    %c0_9 = arith.constant 0 : index
    %c0_10 = arith.constant 0 : index
    %10 = vector.load %arg9[%c0_9, %c0_10] : memref<1x32xf32, #tpu.memory_space<vmem>>, vector<1x32xf32>
    %c0_11 = arith.constant 0 : index
    %c0_12 = arith.constant 0 : index
    %11 = vector.load %arg10[%c0_11, %c0_12] : memref<1x32xf32, #tpu.memory_space<vmem>>, vector<1x32xf32>
    %c0_13 = arith.constant 0 : index
    %c0_14 = arith.constant 0 : index
    %12 = vector.load %arg11[%c0_13, %c0_14] : memref<1x32xf32, #tpu.memory_space<vmem>>, vector<1x32xf32>
    %13 = vector.extract_strided_slice %9 {offsets = [0, 0, 0], sizes = [1, 1, 32], strides = [1, 1, 1]} : vector<1x8x32xf32> to vector<1x1x32xf32>
    %14 = vector.shape_cast %13 : vector<1x1x32xf32> to vector<1x32xf32>
    %cst_15 = arith.constant dense<0.000000e+00> : vector<1x32xf32>
    %15 = tpu.matmul %12, %4, %cst_15 {dimension_numbers = #tpu.dot_dimension_numbers<[1], [0], [0], [1], [0, 0, 1, 1], [], []>} : vector<1x32xf32>, vector<32x32xf32>, vector<1x32xf32> -> vector<1x32xf32>
    %16 = arith.addf %14, %15 : vector<1x32xf32>
    %cst_16 = arith.constant 1.000000e+00 : f32
    %17 = vector.broadcast %cst_16 : f32 to vector<1x32xf32>
    %18 = arith.subf %11, %17 : vector<1x32xf32>
    %cst_17 = arith.constant 0.000000e+00 : f32
    %19 = vector.broadcast %cst_17 : f32 to vector<1x32xf32>
    %20 = arith.cmpf ogt, %18, %19 : vector<1x32xf32>
    %21 = arith.extui %20 : vector<1x32xi1> to vector<1x32xi32>
    %22 = arith.sitofp %21 : vector<1x32xi32> to vector<1x32xf32>
    %23 = vector.shape_cast %11 : vector<1x32xf32> to vector<1x1x32xf32>
    %c0_18 = arith.constant 0 : index
    %c0_19 = arith.constant 0 : index
    %c0_20 = arith.constant 0 : index
    %24 = vector.load %arg6[%c0_18, %c0_19, %c0_20] : memref<1x8x32xf32, #tpu.memory_space<vmem>>, vector<1x1x32xf32>
    tpu.vector_store %arg6[%c0_18, %c0_19, %c0_20], %23 {strides = array<i32>} : memref<1x8x32xf32, #tpu.memory_space<vmem>>, vector<1x1x32xf32>,
    %25 = vector.shape_cast %22 : vector<1x32xf32> to vector<1x1x32xf32>
    %c0_21 = arith.constant 0 : index
    %c0_22 = arith.constant 0 : index
    %c0_23 = arith.constant 0 : index
    %26 = vector.load %arg7[%c0_21, %c0_22, %c0_23] : memref<1x8x32xf32, #tpu.memory_space<vmem>>, vector<1x1x32xf32>
    tpu.vector_store %arg7[%c0_21, %c0_22, %c0_23], %25 {strides = array<i32>} : memref<1x8x32xf32, #tpu.memory_space<vmem>>, vector<1x1x32xf32>,
    %cst_24 = arith.constant 0.818730771 : f32
    %27 = vector.broadcast %cst_24 : f32 to vector<1x32xf32>
    %28 = arith.mulf %27, %10 : vector<1x32xf32>
    %29 = arith.addf %28, %16 : vector<1x32xf32>
    %cst_25 = arith.constant 0.904837429 : f32
    %30 = vector.broadcast %cst_25 : f32 to vector<1x32xf32>
    %31 = arith.mulf %30, %11 : vector<1x32xf32>
    %32 = arith.addf %31, %10 : vector<1x32xf32>
    %cst_26 = arith.constant 1.000000e+00 : f32
    %33 = vector.broadcast %cst_26 : f32 to vector<1x32xf32>
    %34 = arith.subf %33, %22 : vector<1x32xf32>
    %35 = arith.mulf %32, %34 : vector<1x32xf32>
    %36 = vector.extract_strided_slice %9 {offsets = [0, 1, 0], sizes = [1, 1, 32], strides = [1, 1, 1]} : vector<1x8x32xf32> to vector<1x1x32xf32>
    %37 = vector.shape_cast %36 : vector<1x1x32xf32> to vector<1x32xf32>
    %cst_27 = arith.constant dense<0.000000e+00> : vector<1x32xf32>
    %38 = tpu.matmul %22, %4, %cst_27 {dimension_numbers = #tpu.dot_dimension_numbers<[1], [0], [0], [1], [0, 0, 1, 1], [], []>} : vector<1x32xf32>, vector<32x32xf32>, vector<1x32xf32> -> vector<1x32xf32>
    %39 = arith.addf %37, %38 : vector<1x32xf32>
    %cst_28 = arith.constant 1.000000e+00 : f32
    %40 = vector.broadcast %cst_28 : f32 to vector<1x32xf32>
    %41 = arith.subf %35, %40 : vector<1x32xf32>
    %cst_29 = arith.constant 0.000000e+00 : f32
    %42 = vector.broadcast %cst_29 : f32 to vector<1x32xf32>
    %43 = arith.cmpf ogt, %41, %42 : vector<1x32xf32>
    %44 = arith.extui %43 : vector<1x32xi1> to vector<1x32xi32>
    %45 = arith.sitofp %44 : vector<1x32xi32> to vector<1x32xf32>
    %46 = vector.shape_cast %35 : vector<1x32xf32> to vector<1x1x32xf32>
    %c0_30 = arith.constant 0 : index
    %c1 = arith.constant 1 : index
    %c0_31 = arith.constant 0 : index
    %47 = vector.load %arg6[%c0_30, %c1, %c0_31] : memref<1x8x32xf32, #tpu.memory_space<vmem>>, vector<1x1x32xf32>
    tpu.vector_store %arg6[%c0_30, %c1, %c0_31], %46 {strides = array<i32>} : memref<1x8x32xf32, #tpu.memory_space<vmem>>, vector<1x1x32xf32>,
    %48 = vector.shape_cast %45 : vector<1x32xf32> to vector<1x1x32xf32>
    %c0_32 = arith.constant 0 : index
    %c1_33 = arith.constant 1 : index
    %c0_34 = arith.constant 0 : index
    %49 = vector.load %arg7[%c0_32, %c1_33, %c0_34] : memref<1x8x32xf32, #tpu.memory_space<vmem>>, vector<1x1x32xf32>
    tpu.vector_store %arg7[%c0_32, %c1_33, %c0_34], %48 {strides = array<i32>} : memref<1x8x32xf32, #tpu.memory_space<vmem>>, vector<1x1x32xf32>,
    %cst_35 = arith.constant 0.818730771 : f32
    %50 = vector.broadcast %cst_35 : f32 to vector<1x32xf32>
    %51 = arith.mulf %50, %29 : vector<1x32xf32>
    %52 = arith.addf %51, %39 : vector<1x32xf32>
    %cst_36 = arith.constant 0.904837429 : f32
    %53 = vector.broadcast %cst_36 : f32 to vector<1x32xf32>
    %54 = arith.mulf %53, %35 : vector<1x32xf32>
    %55 = arith.addf %54, %29 : vector<1x32xf32>
    %cst_37 = arith.constant 1.000000e+00 : f32
    %56 = vector.broadcast %cst_37 : f32 to vector<1x32xf32>
    %57 = arith.subf %56, %45 : vector<1x32xf32>
    %58 = arith.mulf %55, %57 : vector<1x32xf32>
    %59 = vector.extract_strided_slice %9 {offsets = [0, 2, 0], sizes = [1, 1, 32], strides = [1, 1, 1]} : vector<1x8x32xf32> to vector<1x1x32xf32>
    %60 = vector.shape_cast %59 : vector<1x1x32xf32> to vector<1x32xf32>
    %cst_38 = arith.constant dense<0.000000e+00> : vector<1x32xf32>
    %61 = tpu.matmul %45, %4, %cst_38 {dimension_numbers = #tpu.dot_dimension_numbers<[1], [0], [0], [1], [0, 0, 1, 1], [], []>} : vector<1x32xf32>, vector<32x32xf32>, vector<1x32xf32> -> vector<1x32xf32>
    %62 = arith.addf %60, %61 : vector<1x32xf32>
    %cst_39 = arith.constant 1.000000e+00 : f32
    %63 = vector.broadcast %cst_39 : f32 to vector<1x32xf32>
    %64 = arith.subf %58, %63 : vector<1x32xf32>
    %cst_40 = arith.constant 0.000000e+00 : f32
    %65 = vector.broadcast %cst_40 : f32 to vector<1x32xf32>
    %66 = arith.cmpf ogt, %64, %65 : vector<1x32xf32>
    %67 = arith.extui %66 : vector<1x32xi1> to vector<1x32xi32>
    %68 = arith.sitofp %67 : vector<1x32xi32> to vector<1x32xf32>
    %69 = vector.shape_cast %58 : vector<1x32xf32> to vector<1x1x32xf32>
    %c0_41 = arith.constant 0 : index
    %c2 = arith.constant 2 : index
    %c0_42 = arith.constant 0 : index
    %70 = vector.load %arg6[%c0_41, %c2, %c0_42] : memref<1x8x32xf32, #tpu.memory_space<vmem>>, vector<1x1x32xf32>
    tpu.vector_store %arg6[%c0_41, %c2, %c0_42], %69 {strides = array<i32>} : memref<1x8x32xf32, #tpu.memory_space<vmem>>, vector<1x1x32xf32>,
    %71 = vector.shape_cast %68 : vector<1x32xf32> to vector<1x1x32xf32>
    %c0_43 = arith.constant 0 : index
    %c2_44 = arith.constant 2 : index
    %c0_45 = arith.constant 0 : index
    %72 = vector.load %arg7[%c0_43, %c2_44, %c0_45] : memref<1x8x32xf32, #tpu.memory_space<vmem>>, vector<1x1x32xf32>
    tpu.vector_store %arg7[%c0_43, %c2_44, %c0_45], %71 {strides = array<i32>} : memref<1x8x32xf32, #tpu.memory_space<vmem>>, vector<1x1x32xf32>,
    %cst_46 = arith.constant 0.818730771 : f32
    %73 = vector.broadcast %cst_46 : f32 to vector<1x32xf32>
    %74 = arith.mulf %73, %52 : vector<1x32xf32>
    %75 = arith.addf %74, %62 : vector<1x32xf32>
    %cst_47 = arith.constant 0.904837429 : f32
    %76 = vector.broadcast %cst_47 : f32 to vector<1x32xf32>
    %77 = arith.mulf %76, %58 : vector<1x32xf32>
    %78 = arith.addf %77, %52 : vector<1x32xf32>
    %cst_48 = arith.constant 1.000000e+00 : f32
    %79 = vector.broadcast %cst_48 : f32 to vector<1x32xf32>
    %80 = arith.subf %79, %68 : vector<1x32xf32>
    %81 = arith.mulf %78, %80 : vector<1x32xf32>
    %82 = vector.extract_strided_slice %9 {offsets = [0, 3, 0], sizes = [1, 1, 32], strides = [1, 1, 1]} : vector<1x8x32xf32> to vector<1x1x32xf32>
    %83 = vector.shape_cast %82 : vector<1x1x32xf32> to vector<1x32xf32>
    %cst_49 = arith.constant dense<0.000000e+00> : vector<1x32xf32>
    %84 = tpu.matmul %68, %4, %cst_49 {dimension_numbers = #tpu.dot_dimension_numbers<[1], [0], [0], [1], [0, 0, 1, 1], [], []>} : vector<1x32xf32>, vector<32x32xf32>, vector<1x32xf32> -> vector<1x32xf32>
    %85 = arith.addf %83, %84 : vector<1x32xf32>
    %cst_50 = arith.constant 1.000000e+00 : f32
    %86 = vector.broadcast %cst_50 : f32 to vector<1x32xf32>
    %87 = arith.subf %81, %86 : vector<1x32xf32>
    %cst_51 = arith.constant 0.000000e+00 : f32
    %88 = vector.broadcast %cst_51 : f32 to vector<1x32xf32>
    %89 = arith.cmpf ogt, %87, %88 : vector<1x32xf32>
    %90 = arith.extui %89 : vector<1x32xi1> to vector<1x32xi32>
    %91 = arith.sitofp %90 : vector<1x32xi32> to vector<1x32xf32>
    %92 = vector.shape_cast %81 : vector<1x32xf32> to vector<1x1x32xf32>
    %c0_52 = arith.constant 0 : index
    %c3 = arith.constant 3 : index
    %c0_53 = arith.constant 0 : index
    %93 = vector.load %arg6[%c0_52, %c3, %c0_53] : memref<1x8x32xf32, #tpu.memory_space<vmem>>, vector<1x1x32xf32>
    tpu.vector_store %arg6[%c0_52, %c3, %c0_53], %92 {strides = array<i32>} : memref<1x8x32xf32, #tpu.memory_space<vmem>>, vector<1x1x32xf32>,
    %94 = vector.shape_cast %91 : vector<1x32xf32> to vector<1x1x32xf32>
    %c0_54 = arith.constant 0 : index
    %c3_55 = arith.constant 3 : index
    %c0_56 = arith.constant 0 : index
    %95 = vector.load %arg7[%c0_54, %c3_55, %c0_56] : memref<1x8x32xf32, #tpu.memory_space<vmem>>, vector<1x1x32xf32>
    tpu.vector_store %arg7[%c0_54, %c3_55, %c0_56], %94 {strides = array<i32>} : memref<1x8x32xf32, #tpu.memory_space<vmem>>, vector<1x1x32xf32>,
    %cst_57 = arith.constant 0.818730771 : f32
    %96 = vector.broadcast %cst_57 : f32 to vector<1x32xf32>
    %97 = arith.mulf %96, %75 : vector<1x32xf32>
    %98 = arith.addf %97, %85 : vector<1x32xf32>
    %cst_58 = arith.constant 0.904837429 : f32
    %99 = vector.broadcast %cst_58 : f32 to vector<1x32xf32>
    %100 = arith.mulf %99, %81 : vector<1x32xf32>
    %101 = arith.addf %100, %75 : vector<1x32xf32>
    %cst_59 = arith.constant 1.000000e+00 : f32
    %102 = vector.broadcast %cst_59 : f32 to vector<1x32xf32>
    %103 = arith.subf %102, %91 : vector<1x32xf32>
    %104 = arith.mulf %101, %103 : vector<1x32xf32>
    %105 = vector.extract_strided_slice %9 {offsets = [0, 4, 0], sizes = [1, 1, 32], strides = [1, 1, 1]} : vector<1x8x32xf32> to vector<1x1x32xf32>
    %106 = vector.shape_cast %105 : vector<1x1x32xf32> to vector<1x32xf32>
    %cst_60 = arith.constant dense<0.000000e+00> : vector<1x32xf32>
    %107 = tpu.matmul %91, %4, %cst_60 {dimension_numbers = #tpu.dot_dimension_numbers<[1], [0], [0], [1], [0, 0, 1, 1], [], []>} : vector<1x32xf32>, vector<32x32xf32>, vector<1x32xf32> -> vector<1x32xf32>
    %108 = arith.addf %106, %107 : vector<1x32xf32>
    %cst_61 = arith.constant 1.000000e+00 : f32
    %109 = vector.broadcast %cst_61 : f32 to vector<1x32xf32>
    %110 = arith.subf %104, %109 : vector<1x32xf32>
    %cst_62 = arith.constant 0.000000e+00 : f32
    %111 = vector.broadcast %cst_62 : f32 to vector<1x32xf32>
    %112 = arith.cmpf ogt, %110, %111 : vector<1x32xf32>
    %113 = arith.extui %112 : vector<1x32xi1> to vector<1x32xi32>
    %114 = arith.sitofp %113 : vector<1x32xi32> to vector<1x32xf32>
    %115 = vector.shape_cast %104 : vector<1x32xf32> to vector<1x1x32xf32>
    %c0_63 = arith.constant 0 : index
    %c4 = arith.constant 4 : index
    %c0_64 = arith.constant 0 : index
    %116 = vector.load %arg6[%c0_63, %c4, %c0_64] : memref<1x8x32xf32, #tpu.memory_space<vmem>>, vector<1x1x32xf32>
    tpu.vector_store %arg6[%c0_63, %c4, %c0_64], %115 {strides = array<i32>} : memref<1x8x32xf32, #tpu.memory_space<vmem>>, vector<1x1x32xf32>,
    %117 = vector.shape_cast %114 : vector<1x32xf32> to vector<1x1x32xf32>
    %c0_65 = arith.constant 0 : index
    %c4_66 = arith.constant 4 : index
    %c0_67 = arith.constant 0 : index
    %118 = vector.load %arg7[%c0_65, %c4_66, %c0_67] : memref<1x8x32xf32, #tpu.memory_space<vmem>>, vector<1x1x32xf32>
    tpu.vector_store %arg7[%c0_65, %c4_66, %c0_67], %117 {strides = array<i32>} : memref<1x8x32xf32, #tpu.memory_space<vmem>>, vector<1x1x32xf32>,
    %cst_68 = arith.constant 0.818730771 : f32
    %119 = vector.broadcast %cst_68 : f32 to vector<1x32xf32>
    %120 = arith.mulf %119, %98 : vector<1x32xf32>
    %121 = arith.addf %120, %108 : vector<1x32xf32>
    %cst_69 = arith.constant 0.904837429 : f32
    %122 = vector.broadcast %cst_69 : f32 to vector<1x32xf32>
    %123 = arith.mulf %122, %104 : vector<1x32xf32>
    %124 = arith.addf %123, %98 : vector<1x32xf32>
    %cst_70 = arith.constant 1.000000e+00 : f32
    %125 = vector.broadcast %cst_70 : f32 to vector<1x32xf32>
    %126 = arith.subf %125, %114 : vector<1x32xf32>
    %127 = arith.mulf %124, %126 : vector<1x32xf32>
    %128 = vector.extract_strided_slice %9 {offsets = [0, 5, 0], sizes = [1, 1, 32], strides = [1, 1, 1]} : vector<1x8x32xf32> to vector<1x1x32xf32>
    %129 = vector.shape_cast %128 : vector<1x1x32xf32> to vector<1x32xf32>
    %cst_71 = arith.constant dense<0.000000e+00> : vector<1x32xf32>
    %130 = tpu.matmul %114, %4, %cst_71 {dimension_numbers = #tpu.dot_dimension_numbers<[1], [0], [0], [1], [0, 0, 1, 1], [], []>} : vector<1x32xf32>, vector<32x32xf32>, vector<1x32xf32> -> vector<1x32xf32>
    %131 = arith.addf %129, %130 : vector<1x32xf32>
    %cst_72 = arith.constant 1.000000e+00 : f32
    %132 = vector.broadcast %cst_72 : f32 to vector<1x32xf32>
    %133 = arith.subf %127, %132 : vector<1x32xf32>
    %cst_73 = arith.constant 0.000000e+00 : f32
    %134 = vector.broadcast %cst_73 : f32 to vector<1x32xf32>
    %135 = arith.cmpf ogt, %133, %134 : vector<1x32xf32>
    %136 = arith.extui %135 : vector<1x32xi1> to vector<1x32xi32>
    %137 = arith.sitofp %136 : vector<1x32xi32> to vector<1x32xf32>
    %138 = vector.shape_cast %127 : vector<1x32xf32> to vector<1x1x32xf32>
    %c0_74 = arith.constant 0 : index
    %c5 = arith.constant 5 : index
    %c0_75 = arith.constant 0 : index
    %139 = vector.load %arg6[%c0_74, %c5, %c0_75] : memref<1x8x32xf32, #tpu.memory_space<vmem>>, vector<1x1x32xf32>
    tpu.vector_store %arg6[%c0_74, %c5, %c0_75], %138 {strides = array<i32>} : memref<1x8x32xf32, #tpu.memory_space<vmem>>, vector<1x1x32xf32>,
    %140 = vector.shape_cast %137 : vector<1x32xf32> to vector<1x1x32xf32>
    %c0_76 = arith.constant 0 : index
    %c5_77 = arith.constant 5 : index
    %c0_78 = arith.constant 0 : index
    %141 = vector.load %arg7[%c0_76, %c5_77, %c0_78] : memref<1x8x32xf32, #tpu.memory_space<vmem>>, vector<1x1x32xf32>
    tpu.vector_store %arg7[%c0_76, %c5_77, %c0_78], %140 {strides = array<i32>} : memref<1x8x32xf32, #tpu.memory_space<vmem>>, vector<1x1x32xf32>,
    %cst_79 = arith.constant 0.818730771 : f32
    %142 = vector.broadcast %cst_79 : f32 to vector<1x32xf32>
    %143 = arith.mulf %142, %121 : vector<1x32xf32>
    %144 = arith.addf %143, %131 : vector<1x32xf32>
    %cst_80 = arith.constant 0.904837429 : f32
    %145 = vector.broadcast %cst_80 : f32 to vector<1x32xf32>
    %146 = arith.mulf %145, %127 : vector<1x32xf32>
    %147 = arith.addf %146, %121 : vector<1x32xf32>
    %cst_81 = arith.constant 1.000000e+00 : f32
    %148 = vector.broadcast %cst_81 : f32 to vector<1x32xf32>
    %149 = arith.subf %148, %137 : vector<1x32xf32>
    %150 = arith.mulf %147, %149 : vector<1x32xf32>
    %151 = vector.extract_strided_slice %9 {offsets = [0, 6, 0], sizes = [1, 1, 32], strides = [1, 1, 1]} : vector<1x8x32xf32> to vector<1x1x32xf32>
    %152 = vector.shape_cast %151 : vector<1x1x32xf32> to vector<1x32xf32>
    %cst_82 = arith.constant dense<0.000000e+00> : vector<1x32xf32>
    %153 = tpu.matmul %137, %4, %cst_82 {dimension_numbers = #tpu.dot_dimension_numbers<[1], [0], [0], [1], [0, 0, 1, 1], [], []>} : vector<1x32xf32>, vector<32x32xf32>, vector<1x32xf32> -> vector<1x32xf32>
    %154 = arith.addf %152, %153 : vector<1x32xf32>
    %cst_83 = arith.constant 1.000000e+00 : f32
    %155 = vector.broadcast %cst_83 : f32 to vector<1x32xf32>
    %156 = arith.subf %150, %155 : vector<1x32xf32>
    %cst_84 = arith.constant 0.000000e+00 : f32
    %157 = vector.broadcast %cst_84 : f32 to vector<1x32xf32>
    %158 = arith.cmpf ogt, %156, %157 : vector<1x32xf32>
    %159 = arith.extui %158 : vector<1x32xi1> to vector<1x32xi32>
    %160 = arith.sitofp %159 : vector<1x32xi32> to vector<1x32xf32>
    %161 = vector.shape_cast %150 : vector<1x32xf32> to vector<1x1x32xf32>
    %c0_85 = arith.constant 0 : index
    %c6 = arith.constant 6 : index
    %c0_86 = arith.constant 0 : index
    %162 = vector.load %arg6[%c0_85, %c6, %c0_86] : memref<1x8x32xf32, #tpu.memory_space<vmem>>, vector<1x1x32xf32>
    tpu.vector_store %arg6[%c0_85, %c6, %c0_86], %161 {strides = array<i32>} : memref<1x8x32xf32, #tpu.memory_space<vmem>>, vector<1x1x32xf32>,
    %163 = vector.shape_cast %160 : vector<1x32xf32> to vector<1x1x32xf32>
    %c0_87 = arith.constant 0 : index
    %c6_88 = arith.constant 6 : index
    %c0_89 = arith.constant 0 : index
    %164 = vector.load %arg7[%c0_87, %c6_88, %c0_89] : memref<1x8x32xf32, #tpu.memory_space<vmem>>, vector<1x1x32xf32>
    tpu.vector_store %arg7[%c0_87, %c6_88, %c0_89], %163 {strides = array<i32>} : memref<1x8x32xf32, #tpu.memory_space<vmem>>, vector<1x1x32xf32>,
    %cst_90 = arith.constant 0.818730771 : f32
    %165 = vector.broadcast %cst_90 : f32 to vector<1x32xf32>
    %166 = arith.mulf %165, %144 : vector<1x32xf32>
    %167 = arith.addf %166, %154 : vector<1x32xf32>
    %cst_91 = arith.constant 0.904837429 : f32
    %168 = vector.broadcast %cst_91 : f32 to vector<1x32xf32>
    %169 = arith.mulf %168, %150 : vector<1x32xf32>
    %170 = arith.addf %169, %144 : vector<1x32xf32>
    %cst_92 = arith.constant 1.000000e+00 : f32
    %171 = vector.broadcast %cst_92 : f32 to vector<1x32xf32>
    %172 = arith.subf %171, %160 : vector<1x32xf32>
    %173 = arith.mulf %170, %172 : vector<1x32xf32>
    %174 = vector.extract_strided_slice %9 {offsets = [0, 7, 0], sizes = [1, 1, 32], strides = [1, 1, 1]} : vector<1x8x32xf32> to vector<1x1x32xf32>
    %175 = vector.shape_cast %174 : vector<1x1x32xf32> to vector<1x32xf32>
    %cst_93 = arith.constant dense<0.000000e+00> : vector<1x32xf32>
    %176 = tpu.matmul %160, %4, %cst_93 {dimension_numbers = #tpu.dot_dimension_numbers<[1], [0], [0], [1], [0, 0, 1, 1], [], []>} : vector<1x32xf32>, vector<32x32xf32>, vector<1x32xf32> -> vector<1x32xf32>
    %177 = arith.addf %175, %176 : vector<1x32xf32>
    %cst_94 = arith.constant 1.000000e+00 : f32
    %178 = vector.broadcast %cst_94 : f32 to vector<1x32xf32>
    %179 = arith.subf %173, %178 : vector<1x32xf32>
    %cst_95 = arith.constant 0.000000e+00 : f32
    %180 = vector.broadcast %cst_95 : f32 to vector<1x32xf32>
    %181 = arith.cmpf ogt, %179, %180 : vector<1x32xf32>
    %182 = arith.extui %181 : vector<1x32xi1> to vector<1x32xi32>
    %183 = arith.sitofp %182 : vector<1x32xi32> to vector<1x32xf32>
    %184 = vector.shape_cast %173 : vector<1x32xf32> to vector<1x1x32xf32>
    %c0_96 = arith.constant 0 : index
    %c7 = arith.constant 7 : index
    %c0_97 = arith.constant 0 : index
    %185 = vector.load %arg6[%c0_96, %c7, %c0_97] : memref<1x8x32xf32, #tpu.memory_space<vmem>>, vector<1x1x32xf32>
    tpu.vector_store %arg6[%c0_96, %c7, %c0_97], %184 {strides = array<i32>} : memref<1x8x32xf32, #tpu.memory_space<vmem>>, vector<1x1x32xf32>,
    %186 = vector.shape_cast %183 : vector<1x32xf32> to vector<1x1x32xf32>
    %c0_98 = arith.constant 0 : index
    %c7_99 = arith.constant 7 : index
    %c0_100 = arith.constant 0 : index
    %187 = vector.load %arg7[%c0_98, %c7_99, %c0_100] : memref<1x8x32xf32, #tpu.memory_space<vmem>>, vector<1x1x32xf32>
    tpu.vector_store %arg7[%c0_98, %c7_99, %c0_100], %186 {strides = array<i32>} : memref<1x8x32xf32, #tpu.memory_space<vmem>>, vector<1x1x32xf32>,
    %cst_101 = arith.constant 0.818730771 : f32
    %188 = vector.broadcast %cst_101 : f32 to vector<1x32xf32>
    %189 = arith.mulf %188, %167 : vector<1x32xf32>
    %190 = arith.addf %189, %177 : vector<1x32xf32>
    %cst_102 = arith.constant 0.904837429 : f32
    %191 = vector.broadcast %cst_102 : f32 to vector<1x32xf32>
    %192 = arith.mulf %191, %173 : vector<1x32xf32>
    %193 = arith.addf %192, %167 : vector<1x32xf32>
    %cst_103 = arith.constant 1.000000e+00 : f32
    %194 = vector.broadcast %cst_103 : f32 to vector<1x32xf32>
    %195 = arith.subf %194, %183 : vector<1x32xf32>
    %196 = arith.mulf %193, %195 : vector<1x32xf32>
    %c0_104 = arith.constant 0 : index
    %c0_105 = arith.constant 0 : index
    %197 = vector.load %arg9[%c0_104, %c0_105] : memref<1x32xf32, #tpu.memory_space<vmem>>, vector<1x32xf32>
    tpu.vector_store %arg9[%c0_104, %c0_105], %190 {strides = array<i32>} : memref<1x32xf32, #tpu.memory_space<vmem>>, vector<1x32xf32>,
    %c0_106 = arith.constant 0 : index
    %c0_107 = arith.constant 0 : index
    %198 = vector.load %arg10[%c0_106, %c0_107] : memref<1x32xf32, #tpu.memory_space<vmem>>, vector<1x32xf32>
    tpu.vector_store %arg10[%c0_106, %c0_107], %196 {strides = array<i32>} : memref<1x32xf32, #tpu.memory_space<vmem>>, vector<1x32xf32>,
    %c0_108 = arith.constant 0 : index
    %c0_109 = arith.constant 0 : index
    %199 = vector.load %arg11[%c0_108, %c0_109] : memref<1x32xf32, #tpu.memory_space<vmem>>, vector<1x32xf32>
    tpu.vector_store %arg11[%c0_108, %c0_109], %183 {strides = array<i32>} : memref<1x32xf32, #tpu.memory_space<vmem>>, vector<1x32xf32>,
    %c0_110 = arith.constant 0 : index
    %c0_111 = arith.constant 0 : index
    %c0_112 = arith.constant 0 : index
    %200 = vector.load %arg7[%c0_110, %c0_111, %c0_112] : memref<1x8x32xf32, #tpu.memory_space<vmem>>, vector<1x8x32xf32>
    %201 = vector.shape_cast %200 : vector<1x8x32xf32> to vector<8x32xf32>
    %cst_113 = arith.constant dense<0.000000e+00> : vector<8x8xf32>
    %202 = tpu.matmul %201, %5, %cst_113 {dimension_numbers = #tpu.dot_dimension_numbers<[1], [0], [0], [1], [0, 0, 1, 1], [], []>} : vector<8x32xf32>, vector<32x8xf32>, vector<8x8xf32> -> vector<8x8xf32>
    %203 = vector.shape_cast %202 : vector<8x8xf32> to vector<1x8x8xf32>
    %c0_114 = arith.constant 0 : index
    %c0_115 = arith.constant 0 : index
    %204 = vector.load %arg12[%c0_114, %c0_115] : memref<1x8xf32, #tpu.memory_space<vmem>>, vector<1x8xf32>
    %c0_116 = arith.constant 0 : index
    %c0_117 = arith.constant 0 : index
    %205 = vector.load %arg13[%c0_116, %c0_117] : memref<1x8xf32, #tpu.memory_space<vmem>>, vector<1x8xf32>
    %cst_118 = arith.constant 0.818730771 : f32
    %206 = vector.broadcast %cst_118 : f32 to vector<1x8xf32>
    %207 = arith.mulf %206, %204 : vector<1x8xf32>
    %208 = vector.extract_strided_slice %203 {offsets = [0, 0, 0], sizes = [1, 1, 8], strides = [1, 1, 1]} : vector<1x8x8xf32> to vector<1x1x8xf32>
    %209 = vector.shape_cast %208 : vector<1x1x8xf32> to vector<1x8xf32>
    %210 = arith.addf %207, %209 : vector<1x8xf32>
    %cst_119 = arith.constant 0.904837429 : f32
    %211 = vector.broadcast %cst_119 : f32 to vector<1x8xf32>
    %212 = arith.mulf %211, %205 : vector<1x8xf32>
    %213 = arith.addf %212, %204 : vector<1x8xf32>
    %214 = vector.shape_cast %213 : vector<1x8xf32> to vector<1x1x8xf32>
    %c0_120 = arith.constant 0 : index
    %c0_121 = arith.constant 0 : index
    %c0_122 = arith.constant 0 : index
    %215 = vector.load %arg8[%c0_120, %c0_121, %c0_122] : memref<1x8x8xf32, #tpu.memory_space<vmem>>, vector<1x1x8xf32>
    tpu.vector_store %arg8[%c0_120, %c0_121, %c0_122], %214 {strides = array<i32>} : memref<1x8x8xf32, #tpu.memory_space<vmem>>, vector<1x1x8xf32>,
    %cst_123 = arith.constant 0.818730771 : f32
    %216 = vector.broadcast %cst_123 : f32 to vector<1x8xf32>
    %217 = arith.mulf %216, %210 : vector<1x8xf32>
    %218 = vector.extract_strided_slice %203 {offsets = [0, 1, 0], sizes = [1, 1, 8], strides = [1, 1, 1]} : vector<1x8x8xf32> to vector<1x1x8xf32>
    %219 = vector.shape_cast %218 : vector<1x1x8xf32> to vector<1x8xf32>
    %220 = arith.addf %217, %219 : vector<1x8xf32>
    %cst_124 = arith.constant 0.904837429 : f32
    %221 = vector.broadcast %cst_124 : f32 to vector<1x8xf32>
    %222 = arith.mulf %221, %213 : vector<1x8xf32>
    %223 = arith.addf %222, %210 : vector<1x8xf32>
    %224 = vector.shape_cast %223 : vector<1x8xf32> to vector<1x1x8xf32>
    %c0_125 = arith.constant 0 : index
    %c1_126 = arith.constant 1 : index
    %c0_127 = arith.constant 0 : index
    %225 = vector.load %arg8[%c0_125, %c1_126, %c0_127] : memref<1x8x8xf32, #tpu.memory_space<vmem>>, vector<1x1x8xf32>
    tpu.vector_store %arg8[%c0_125, %c1_126, %c0_127], %224 {strides = array<i32>} : memref<1x8x8xf32, #tpu.memory_space<vmem>>, vector<1x1x8xf32>,
    %cst_128 = arith.constant 0.818730771 : f32
    %226 = vector.broadcast %cst_128 : f32 to vector<1x8xf32>
    %227 = arith.mulf %226, %220 : vector<1x8xf32>
    %228 = vector.extract_strided_slice %203 {offsets = [0, 2, 0], sizes = [1, 1, 8], strides = [1, 1, 1]} : vector<1x8x8xf32> to vector<1x1x8xf32>
    %229 = vector.shape_cast %228 : vector<1x1x8xf32> to vector<1x8xf32>
    %230 = arith.addf %227, %229 : vector<1x8xf32>
    %cst_129 = arith.constant 0.904837429 : f32
    %231 = vector.broadcast %cst_129 : f32 to vector<1x8xf32>
    %232 = arith.mulf %231, %223 : vector<1x8xf32>
    %233 = arith.addf %232, %220 : vector<1x8xf32>
    %234 = vector.shape_cast %233 : vector<1x8xf32> to vector<1x1x8xf32>
    %c0_130 = arith.constant 0 : index
    %c2_131 = arith.constant 2 : index
    %c0_132 = arith.constant 0 : index
    %235 = vector.load %arg8[%c0_130, %c2_131, %c0_132] : memref<1x8x8xf32, #tpu.memory_space<vmem>>, vector<1x1x8xf32>
    tpu.vector_store %arg8[%c0_130, %c2_131, %c0_132], %234 {strides = array<i32>} : memref<1x8x8xf32, #tpu.memory_space<vmem>>, vector<1x1x8xf32>,
    %cst_133 = arith.constant 0.818730771 : f32
    %236 = vector.broadcast %cst_133 : f32 to vector<1x8xf32>
    %237 = arith.mulf %236, %230 : vector<1x8xf32>
    %238 = vector.extract_strided_slice %203 {offsets = [0, 3, 0], sizes = [1, 1, 8], strides = [1, 1, 1]} : vector<1x8x8xf32> to vector<1x1x8xf32>
    %239 = vector.shape_cast %238 : vector<1x1x8xf32> to vector<1x8xf32>
    %240 = arith.addf %237, %239 : vector<1x8xf32>
    %cst_134 = arith.constant 0.904837429 : f32
    %241 = vector.broadcast %cst_134 : f32 to vector<1x8xf32>
    %242 = arith.mulf %241, %233 : vector<1x8xf32>
    %243 = arith.addf %242, %230 : vector<1x8xf32>
    %244 = vector.shape_cast %243 : vector<1x8xf32> to vector<1x1x8xf32>
    %c0_135 = arith.constant 0 : index
    %c3_136 = arith.constant 3 : index
    %c0_137 = arith.constant 0 : index
    %245 = vector.load %arg8[%c0_135, %c3_136, %c0_137] : memref<1x8x8xf32, #tpu.memory_space<vmem>>, vector<1x1x8xf32>
    tpu.vector_store %arg8[%c0_135, %c3_136, %c0_137], %244 {strides = array<i32>} : memref<1x8x8xf32, #tpu.memory_space<vmem>>, vector<1x1x8xf32>,
    %cst_138 = arith.constant 0.818730771 : f32
    %246 = vector.broadcast %cst_138 : f32 to vector<1x8xf32>
    %247 = arith.mulf %246, %240 : vector<1x8xf32>
    %248 = vector.extract_strided_slice %203 {offsets = [0, 4, 0], sizes = [1, 1, 8], strides = [1, 1, 1]} : vector<1x8x8xf32> to vector<1x1x8xf32>
    %249 = vector.shape_cast %248 : vector<1x1x8xf32> to vector<1x8xf32>
    %250 = arith.addf %247, %249 : vector<1x8xf32>
    %cst_139 = arith.constant 0.904837429 : f32
    %251 = vector.broadcast %cst_139 : f32 to vector<1x8xf32>
    %252 = arith.mulf %251, %243 : vector<1x8xf32>
    %253 = arith.addf %252, %240 : vector<1x8xf32>
    %254 = vector.shape_cast %253 : vector<1x8xf32> to vector<1x1x8xf32>
    %c0_140 = arith.constant 0 : index
    %c4_141 = arith.constant 4 : index
    %c0_142 = arith.constant 0 : index
    %255 = vector.load %arg8[%c0_140, %c4_141, %c0_142] : memref<1x8x8xf32, #tpu.memory_space<vmem>>, vector<1x1x8xf32>
    tpu.vector_store %arg8[%c0_140, %c4_141, %c0_142], %254 {strides = array<i32>} : memref<1x8x8xf32, #tpu.memory_space<vmem>>, vector<1x1x8xf32>,
    %cst_143 = arith.constant 0.818730771 : f32
    %256 = vector.broadcast %cst_143 : f32 to vector<1x8xf32>
    %257 = arith.mulf %256, %250 : vector<1x8xf32>
    %258 = vector.extract_strided_slice %203 {offsets = [0, 5, 0], sizes = [1, 1, 8], strides = [1, 1, 1]} : vector<1x8x8xf32> to vector<1x1x8xf32>
    %259 = vector.shape_cast %258 : vector<1x1x8xf32> to vector<1x8xf32>
    %260 = arith.addf %257, %259 : vector<1x8xf32>
    %cst_144 = arith.constant 0.904837429 : f32
    %261 = vector.broadcast %cst_144 : f32 to vector<1x8xf32>
    %262 = arith.mulf %261, %253 : vector<1x8xf32>
    %263 = arith.addf %262, %250 : vector<1x8xf32>
    %264 = vector.shape_cast %263 : vector<1x8xf32> to vector<1x1x8xf32>
    %c0_145 = arith.constant 0 : index
    %c5_146 = arith.constant 5 : index
    %c0_147 = arith.constant 0 : index
    %265 = vector.load %arg8[%c0_145, %c5_146, %c0_147] : memref<1x8x8xf32, #tpu.memory_space<vmem>>, vector<1x1x8xf32>
    tpu.vector_store %arg8[%c0_145, %c5_146, %c0_147], %264 {strides = array<i32>} : memref<1x8x8xf32, #tpu.memory_space<vmem>>, vector<1x1x8xf32>,
    %cst_148 = arith.constant 0.818730771 : f32
    %266 = vector.broadcast %cst_148 : f32 to vector<1x8xf32>
    %267 = arith.mulf %266, %260 : vector<1x8xf32>
    %268 = vector.extract_strided_slice %203 {offsets = [0, 6, 0], sizes = [1, 1, 8], strides = [1, 1, 1]} : vector<1x8x8xf32> to vector<1x1x8xf32>
    %269 = vector.shape_cast %268 : vector<1x1x8xf32> to vector<1x8xf32>
    %270 = arith.addf %267, %269 : vector<1x8xf32>
    %cst_149 = arith.constant 0.904837429 : f32
    %271 = vector.broadcast %cst_149 : f32 to vector<1x8xf32>
    %272 = arith.mulf %271, %263 : vector<1x8xf32>
    %273 = arith.addf %272, %260 : vector<1x8xf32>
    %274 = vector.shape_cast %273 : vector<1x8xf32> to vector<1x1x8xf32>
    %c0_150 = arith.constant 0 : index
    %c6_151 = arith.constant 6 : index
    %c0_152 = arith.constant 0 : index
    %275 = vector.load %arg8[%c0_150, %c6_151, %c0_152] : memref<1x8x8xf32, #tpu.memory_space<vmem>>, vector<1x1x8xf32>
    tpu.vector_store %arg8[%c0_150, %c6_151, %c0_152], %274 {strides = array<i32>} : memref<1x8x8xf32, #tpu.memory_space<vmem>>, vector<1x1x8xf32>,
    %cst_153 = arith.constant 0.818730771 : f32
    %276 = vector.broadcast %cst_153 : f32 to vector<1x8xf32>
    %277 = arith.mulf %276, %270 : vector<1x8xf32>
    %278 = vector.extract_strided_slice %203 {offsets = [0, 7, 0], sizes = [1, 1, 8], strides = [1, 1, 1]} : vector<1x8x8xf32> to vector<1x1x8xf32>
    %279 = vector.shape_cast %278 : vector<1x1x8xf32> to vector<1x8xf32>
    %280 = arith.addf %277, %279 : vector<1x8xf32>
    %cst_154 = arith.constant 0.904837429 : f32
    %281 = vector.broadcast %cst_154 : f32 to vector<1x8xf32>
    %282 = arith.mulf %281, %273 : vector<1x8xf32>
    %283 = arith.addf %282, %270 : vector<1x8xf32>
    %284 = vector.shape_cast %283 : vector<1x8xf32> to vector<1x1x8xf32>
    %c0_155 = arith.constant 0 : index
    %c7_156 = arith.constant 7 : index
    %c0_157 = arith.constant 0 : index
    %285 = vector.load %arg8[%c0_155, %c7_156, %c0_157] : memref<1x8x8xf32, #tpu.memory_space<vmem>>, vector<1x1x8xf32>
    tpu.vector_store %arg8[%c0_155, %c7_156, %c0_157], %284 {strides = array<i32>} : memref<1x8x8xf32, #tpu.memory_space<vmem>>, vector<1x1x8xf32>,
    %c0_158 = arith.constant 0 : index
    %c0_159 = arith.constant 0 : index
    %286 = vector.load %arg12[%c0_158, %c0_159] : memref<1x8xf32, #tpu.memory_space<vmem>>, vector<1x8xf32>
    tpu.vector_store %arg12[%c0_158, %c0_159], %280 {strides = array<i32>} : memref<1x8xf32, #tpu.memory_space<vmem>>, vector<1x8xf32>,
    %c0_160 = arith.constant 0 : index
    %c0_161 = arith.constant 0 : index
    %287 = vector.load %arg13[%c0_160, %c0_161] : memref<1x8xf32, #tpu.memory_space<vmem>>, vector<1x8xf32>
    tpu.vector_store %arg13[%c0_160, %c0_161], %283 {strides = array<i32>} : memref<1x8xf32, #tpu.memory_space<vmem>>, vector<1x8xf32>,
    return
  }
  func.func @transform_0(%arg0: i32, %arg1: i32) -> (i32, i32, i32) {
    %c0_i32 = arith.constant 0 : i32
    %c0_i32_0 = arith.constant 0 : i32
    return %arg0, %arg1, %c0_i32 : i32, i32, i32
  }
  func.func @transform_1(%arg0: i32, %arg1: i32) -> (i32, i32) {
    %c0_i32 = arith.constant 0 : i32
    %c0_i32_0 = arith.constant 0 : i32
    %c0_i32_1 = arith.constant 0 : i32
    return %c0_i32, %c0_i32_0 : i32, i32
  }
  func.func @transform_2(%arg0: i32, %arg1: i32) -> (i32, i32) {
    %c0_i32 = arith.constant 0 : i32
    %c0_i32_0 = arith.constant 0 : i32
    %c0_i32_1 = arith.constant 0 : i32
    return %c0_i32, %c0_i32_0 : i32, i32
  }
  func.func @transform_3(%arg0: i32, %arg1: i32) -> (i32, i32) {
    %c0_i32 = arith.constant 0 : i32
    %c0_i32_0 = arith.constant 0 : i32
    %c0_i32_1 = arith.constant 0 : i32
    return %c0_i32, %c0_i32_0 : i32, i32
  }
  func.func @transform_4(%arg0: i32, %arg1: i32) -> (i32, i32, i32) {
    %c0_i32 = arith.constant 0 : i32
    %c0_i32_0 = arith.constant 0 : i32
    return %arg0, %arg1, %c0_i32 : i32, i32, i32
  }
  func.func @transform_5(%arg0: i32, %arg1: i32) -> (i32, i32, i32) {
    %c0_i32 = arith.constant 0 : i32
    %c0_i32_0 = arith.constant 0 : i32
    return %arg0, %arg1, %c0_i32 : i32, i32, i32
  }
  func.func @transform_6(%arg0: i32, %arg1: i32) -> (i32, i32, i32) {
    %c0_i32 = arith.constant 0 : i32
    %c0_i32_0 = arith.constant 0 : i32
    return %arg0, %arg1, %c0_i32 : i32, i32, i32
  }
}

</mosaic_0001>

<llo_original>
// kernel: tpu_custom_call.1
$region0: #{tpu_custom_call.1}
  #allocation0 [shape = 'u32[]', space=smem, size = 0x4, offset = 0x4, fixed_abs, tag = 'smem constant byte address 0x4 - core index']
  #allocation1 [shape = 'u32[72,128]{1,0:T(1,128)}', space=vmem, size = 0x9000, scoped, tag = 'internal scratch']
  #allocation2 [shape = 'f32[1,32]{1,0:T(1,128)}', space=vmem, size = 0x200, scoped, tag = 'scratch operand']
  #allocation3 [shape = 'f32[1,32]{1,0:T(1,128)}', space=vmem, size = 0x200, scoped, tag = 'scratch operand']
  #allocation4 [shape = 'f32[1,32]{1,0:T(1,128)}', space=vmem, size = 0x200, scoped, tag = 'scratch operand']
  #allocation5 [shape = 'f32[1,8]{1,0:T(1,128)}', space=vmem, size = 0x200, scoped, tag = 'scratch operand']
  #allocation6 [shape = 'f32[1,8]{1,0:T(1,128)}', space=vmem, size = 0x200, scoped, tag = 'scratch operand']
  %s0 = inlined_call_operand.vmem [shape: f32[2,16,16], index: 0, kind: input, shape index: {}]
  %s1 = inlined_call_operand.hbm [shape: f32[16,32], index: 1, kind: input, shape index: {}]
  %s2 = inlined_call_operand.hbm [shape: f32[32,32], index: 2, kind: input, shape index: {}]
  %s3 = inlined_call_operand.vmem [shape: f32[32,8], index: 3, kind: input, shape index: {}]
  %s4 = inlined_call_operand.hbm [shape: f32[2,16,32], index: 4, kind: output, shape index: {0}]
  %s5 = inlined_call_operand.hbm [shape: f32[2,16,32], index: 5, kind: output, shape index: {1}]
  %s6 = inlined_call_operand.vmem [shape: f32[2,16,8], index: 6, kind: output, shape index: {2}]
  %7 = xla_tuple %s4, %s5, %s6
  %s8 = sld [smem:[#allocation0]]
  $region77: #{tpu_custom_call.1} parent=0
    _
  %s10 = ssub.s32 1, %s8
  %s11 = scalar_select 0, %s10, %s8
  $region1: #{tpu_custom_call.1} parent=0
    #allocation7 [shape = 'u8[8192]{0}', space=vmem, size = 0x2000, scoped, tag = 'input window, operand 1, single buffered']
    #allocation8 [shape = 's32[2]{0}', space=sflag, size = 0x8, scoped, tag = 'scoped memory for tpu_custom_call.1']
    #allocation9 [shape = 's32[2]{0}', space=sflag, size = 0x8, scoped, tag = 'scoped memory for tpu_custom_call.1']
    #allocation10 [shape = 'u8[16384]{0}', space=vmem, size = 0x4000, scoped, tag = 'input window, operand 2, single buffered']
    #allocation11 [shape = 's32[1]{0}', space=sflag, size = 0x4, scoped, tag = 'scoped memory for tpu_custom_call.1']
    #allocation12 [shape = 'u8[8192]{0}', space=vmem, size = 0x2000, scoped, tag = 'output window, operand 0']
    #allocation13 [shape = 'u8[8192]{0}', space=vmem, size = 0x2000, scoped, tag = 'output window, operand 1']
    #allocation14 [shape = 's32[2]{0}', space=sflag, size = 0x8, scoped, tag = 'scoped memory for tpu_custom_call.1']
    %12 = vsyncpa [#allocation8], 0
    %13 = vsyncpa [#allocation11], 0
    %14 = vsyncpa [#allocation9], 0
    %s15 = scalar_lea.sflag [#allocation9], 1
    %16 = vsyncpa %s15, 0
    %17 = vsyncpa [#allocation14], 0
    %s18 = scalar_lea.sflag [#allocation14], 1
    %19 = vsyncpa %s18, 0
    loop: start=0, step=1, limit=6
    $region2: #{tpu_custom_call.1} parent=1 // loop_pre_header
      _
    $region3: #{tpu_custom_call.1} parent=1 // loop_header
      %s21 = sphi 0, %s25
      %p22 = scmp.ge.s32.totalorder %s21, 6
      %s28 = sphi 0, %s40
      %s29 = sphi 0, %s36
      %s30 = sphi 0, %s28
      %s31 = sphi 0, %s29
      %s32 = sphi 0, %s30
      %s33 = sphi 0, %s31
      %s45 = sphi 0, %s47
      %s48 = sphi 0, %s45
      %s49 = sphi 0, %s48
      %s65 = sphi 0, %s49
      %s69 = sphi 0, %s69
      %s71 = sphi 0, %s69
      %s72 = sphi 0, %s71
      %s86 = sphi 0, %s72
      %s90 = sphi 0, %s90
      %s92 = sphi 0, %s90
      %s93 = sphi 0, %s92
      %s107 = sphi 0, %s93
      %s111 = sphi 0, %s111
      %s113 = sphi 0, %s111
      %s114 = sphi 0, %s113
      %s128 = sphi 0, %s114
      %s136 = sphi 0, %s138
      %s139 = sphi 0, %s136
      %s140 = sphi 0, %s139
      %s156 = sphi 0, %s140
      %s164 = sphi 0, %s166
      %s167 = sphi 0, %s164
      %s168 = sphi 0, %s167
      %s184 = sphi 0, %s168
      %s192 = sphi 0, %s194
      %s195 = sphi 0, %s192
      %s196 = sphi 0, %s195
      %s212 = sphi 0, %s196
    $region4: #{tpu_custom_call.1} parent=1 // loop_header_branch
      %24 = sbr.rel (%p22) target = $region8
    $region5: #{tpu_custom_call.1} parent=1 // loop_body
      %s26 = ssub.s32 %s21, 1
      %s27 = ssub.s32 %s21, 2
      %s34 = sadd.s32 1, %s29
      %p35 = scmp.ge.s32.totalorder %s34, 2
      %s36 = scalar_select %p35, 0, %s34
      %s37 = sadd.s32 1, %s28
      %s38 = scalar_select %p35, %s37, %s28
      %p39 = scmp.ge.s32.totalorder %s38, 2
      %s40 = scalar_select %p39, 0, %s38
      %s41 = ssub.s32 %s28, %s40
      %s42 = ssub.s32 %s29, %s36
      %s43 = sor.u32 %s41, %s42
      %p44 = scmp.eq.s32.totalorder %s43, 0
      %s46 = sadd.s32 %s45, 1
      %s47 = scalar_select %p44, %s45, %s46
      %p50 = pneg %p44
      %p51 = scmp.eq.s32.totalorder %s21, 3
      %p52 = por %p50, %p51
      %p53 = scmp.ne.s32.totalorder %s45, %s48
      %p54 = scmp.eq.s32.totalorder %s21, 0
      %p55 = por %p53, %p54
      %p56 = scmp.ne.s32.totalorder %s45, %s48
      %p57 = scmp.eq.s32.totalorder %s26, 3
      %p58 = por %p56, %p57
      %p59 = scmp.ne.s32.totalorder %s48, %s49
      %p60 = scmp.eq.s32.totalorder %s26, 0
      %p61 = por %p59, %p60
      %p62 = scmp.ne.s32.totalorder %s48, %s49
      %p63 = scmp.eq.s32.totalorder %s27, 3
      %p64 = por %p62, %p63
      %p66 = scmp.ne.s32.totalorder %s49, %s65
      %p67 = scmp.eq.s32.totalorder %s27, 0
      %p68 = por %p66, %p67
      %s70 = sadd.s32 %s69, 1
      %p73 = scmp.eq.s32.totalorder %s21, 3
      %p74 = scmp.ne.s32.totalorder %s69, %s71
      %p75 = scmp.eq.s32.totalorder %s21, 0
      %p76 = por %p74, %p75
      %p77 = scmp.ne.s32.totalorder %s69, %s71
      %p78 = scmp.eq.s32.totalorder %s26, 3
      %p79 = por %p77, %p78
      %p80 = scmp.ne.s32.totalorder %s71, %s72
      %p81 = scmp.eq.s32.totalorder %s26, 0
      %p82 = por %p80, %p81
      %p83 = scmp.ne.s32.totalorder %s71, %s72
      %p84 = scmp.eq.s32.totalorder %s27, 3
      %p85 = por %p83, %p84
      %p87 = scmp.ne.s32.totalorder %s72, %s86
      %p88 = scmp.eq.s32.totalorder %s27, 0
      %p89 = por %p87, %p88
      %s91 = sadd.s32 %s90, 1
      %p94 = scmp.eq.s32.totalorder %s21, 3
      %p95 = scmp.ne.s32.totalorder %s90, %s92
      %p96 = scmp.eq.s32.totalorder %s21, 0
      %p97 = por %p95, %p96
      %p98 = scmp.ne.s32.totalorder %s90, %s92
      %p99 = scmp.eq.s32.totalorder %s26, 3
      %p100 = por %p98, %p99
      %p101 = scmp.ne.s32.totalorder %s92, %s93
      %p102 = scmp.eq.s32.totalorder %s26, 0
      %p103 = por %p101, %p102
      %p104 = scmp.ne.s32.totalorder %s92, %s93
      %p105 = scmp.eq.s32.totalorder %s27, 3
      %p106 = por %p104, %p105
      %p108 = scmp.ne.s32.totalorder %s93, %s107
      %p109 = scmp.eq.s32.totalorder %s27, 0
      %p110 = por %p108, %p109
      %s112 = sadd.s32 %s111, 1
      %p115 = scmp.eq.s32.totalorder %s21, 3
      %p116 = scmp.ne.s32.totalorder %s111, %s113
      %p117 = scmp.eq.s32.totalorder %s21, 0
      %p118 = por %p116, %p117
      %p119 = scmp.ne.s32.totalorder %s111, %s113
      %p120 = scmp.eq.s32.totalorder %s26, 3
      %p121 = por %p119, %p120
      %p122 = scmp.ne.s32.totalorder %s113, %s114
      %p123 = scmp.eq.s32.totalorder %s26, 0
      %p124 = por %p122, %p123
      %p125 = scmp.ne.s32.totalorder %s113, %s114
      %p126 = scmp.eq.s32.totalorder %s27, 3
      %p127 = por %p125, %p126
      %p129 = scmp.ne.s32.totalorder %s114, %s128
      %p130 = scmp.eq.s32.totalorder %s27, 0
      %p131 = por %p129, %p130
      %s132 = ssub.s32 %s28, %s40
      %s133 = ssub.s32 %s29, %s36
      %s134 = sor.u32 %s132, %s133
      %p135 = scmp.eq.s32.totalorder %s134, 0
      %s137 = sadd.s32 %s136, 1
      %s138 = scalar_select %p135, %s136, %s137
      %p141 = pneg %p135
      %p142 = scmp.eq.s32.totalorder %s21, 3
      %p143 = por %p141, %p142
      %p144 = scmp.ne.s32.totalorder %s136, %s139
      %p145 = scmp.eq.s32.totalorder %s21, 0
      %p146 = por %p144, %p145
      %p147 = scmp.ne.s32.totalorder %s136, %s139
      %p148 = scmp.eq.s32.totalorder %s26, 3
      %p149 = por %p147, %p148
      %p150 = scmp.ne.s32.totalorder %s139, %s140
      %p151 = scmp.eq.s32.totalorder %s26, 0
      %p152 = por %p150, %p151
      %p153 = scmp.ne.s32.totalorder %s139, %s140
      %p154 = scmp.eq.s32.totalorder %s27, 3
      %p155 = por %p153, %p154
      %p157 = scmp.ne.s32.totalorder %s140, %s156
      %p158 = scmp.eq.s32.totalorder %s27, 0
      %p159 = por %p157, %p158
      %s160 = ssub.s32 %s28, %s40
      %s161 = ssub.s32 %s29, %s36
      %s162 = sor.u32 %s160, %s161
      %p163 = scmp.eq.s32.totalorder %s162, 0
      %s165 = sadd.s32 %s164, 1
      %s166 = scalar_select %p163, %s164, %s165
      %p169 = pneg %p163
      %p170 = scmp.eq.s32.totalorder %s21, 3
      %p171 = por %p169, %p170
      %p172 = scmp.ne.s32.totalorder %s164, %s167
      %p173 = scmp.eq.s32.totalorder %s21, 0
      %p174 = por %p172, %p173
      %p175 = scmp.ne.s32.totalorder %s164, %s167
      %p176 = scmp.eq.s32.totalorder %s26, 3
      %p177 = por %p175, %p176
      %p178 = scmp.ne.s32.totalorder %s167, %s168
      %p179 = scmp.eq.s32.totalorder %s26, 0
      %p180 = por %p178, %p179
      %p181 = scmp.ne.s32.totalorder %s167, %s168
      %p182 = scmp.eq.s32.totalorder %s27, 3
      %p183 = por %p181, %p182
      %p185 = scmp.ne.s32.totalorder %s168, %s184
      %p186 = scmp.eq.s32.totalorder %s27, 0
      %p187 = por %p185, %p186
      %s188 = ssub.s32 %s28, %s40
      %s189 = ssub.s32 %s29, %s36
      %s190 = sor.u32 %s188, %s189
      %p191 = scmp.eq.s32.totalorder %s190, 0
      %s193 = sadd.s32 %s192, 1
      %s194 = scalar_select %p191, %s192, %s193
      %p197 = pneg %p191
      %p198 = scmp.eq.s32.totalorder %s21, 3
      %p199 = por %p197, %p198
      %p200 = scmp.ne.s32.totalorder %s192, %s195
      %p201 = scmp.eq.s32.totalorder %s21, 0
      %p202 = por %p200, %p201
      %p203 = scmp.ne.s32.totalorder %s192, %s195
      %p204 = scmp.eq.s32.totalorder %s26, 3
      %p205 = por %p203, %p204
      %p206 = scmp.ne.s32.totalorder %s195, %s196
      %p207 = scmp.eq.s32.totalorder %s26, 0
      %p208 = por %p206, %p207
      %p209 = scmp.ne.s32.totalorder %s195, %s196
      %p210 = scmp.eq.s32.totalorder %s27, 3
      %p211 = por %p209, %p210
      %p213 = scmp.ne.s32.totalorder %s196, %s212
      %p214 = scmp.eq.s32.totalorder %s27, 0
      %p215 = por %p213, %p214
      %p216 = scmp.le.s32.totalorder 1, %s21
      %p217 = scmp.lt.s32.totalorder %s21, 5
      %p218 = pnand %p216, %p217
      %p219 = pneg %p218
      // Predicated region
      $region9: #{tpu_custom_call.1} parent=5 // pred_check
        _
      $region10: #{tpu_custom_call.1} parent=5 // pred_check_branch
        %221 = sbr.rel (%p218) target = $region12
      $region11: #{tpu_custom_call.1} parent=5 // pred_region
        %s222 = ssub.s32 %s21, 1
        // Predicated region
        $region13: #{tpu_custom_call.1} parent=11 // pred_check
          %p223 = pneg %p82
        $region14: #{tpu_custom_call.1} parent=11 // pred_check_branch
          %225 = sbr.rel (%p223) target = $region16
        $region15: #{tpu_custom_call.1} parent=11 // pred_region
          %227 = vsyncadd [#allocation8], 0
          %s228 = sshll.u32 %s1, 4
          %s229 = int_to_ptr.hbm [resolvable:$true] %s228
          %s230 = sshll.u32 [#allocation7], 4
          %s231 = int_to_ptr.vmem [resolvable:$true] %s230
          %236 = dma.hbm_to_vmem [thread:$0]  %s229, 256, %s231, [#allocation8], 128, 128, 8
        $region16: #{tpu_custom_call.1} parent=11 // pred_fallthru
          _
        // Predicated region
        $region17: #{tpu_custom_call.1} parent=11 // pred_check
          %p237 = pneg %p103
        $region18: #{tpu_custom_call.1} parent=11 // pred_check_branch
          %239 = sbr.rel (%p237) target = $region20
        $region19: #{tpu_custom_call.1} parent=11 // pred_region
          %241 = vsyncadd [#allocation11], 0
          %s242 = sshll.u32 %s2, 4
          %s243 = int_to_ptr.hbm [resolvable:$true] %s242
          %s244 = sshll.u32 [#allocation10], 4
          %s245 = int_to_ptr.vmem [resolvable:$true] %s244
          %250 = dma.hbm_to_vmem [thread:$0]  %s243, 512, %s245, [#allocation11], 128, 128, 8
        $region20: #{tpu_custom_call.1} parent=11 // pred_fallthru
          _
        // Predicated region
        $region21: #{tpu_custom_call.1} parent=11 // pred_check
          %p251 = pneg %p124
        $region22: #{tpu_custom_call.1} parent=11 // pred_check_branch
          %253 = sbr.rel (%p251) target = $region24
        $region23: #{tpu_custom_call.1} parent=11 // pred_region
          _
        $region24: #{tpu_custom_call.1} parent=11 // pred_fallthru
          _
      $region12: #{tpu_custom_call.1} parent=5 // pred_fallthru
        _
      %p254 = scmp.lt.s32.totalorder %s21, 4
      // Predicated region
      $region25: #{tpu_custom_call.1} parent=5 // pred_check
        %p255 = pneg %p254
      $region26: #{tpu_custom_call.1} parent=5 // pred_check_branch
        %257 = sbr.rel (%p255) target = $region28
      $region27: #{tpu_custom_call.1} parent=5 // pred_region
        // Predicated region
        $region29: #{tpu_custom_call.1} parent=27 // pred_check
          %p258 = pneg %p55
        $region30: #{tpu_custom_call.1} parent=27 // pred_check_branch
          %260 = sbr.rel (%p258) target = $region32
        $region31: #{tpu_custom_call.1} parent=27 // pred_region
          %p261 = scmp.lt.s32.totalorder %s28, 1
          %s262 = scalar_select %p261, %s28, 1
          %p263 = scmp.lt.s32.totalorder %s29, 1
          %s264 = scalar_select %p263, %s29, 1
          %s265 = smul.addr %s262, 2
          %s266 = sadd.s32 %s264, %s265
          %s267 = smul.addr %s266, 8
          %s268 = scalar_lea.vmem %s0, %s267
        $region32: #{tpu_custom_call.1} parent=27 // pred_fallthru
          _
      $region28: #{tpu_custom_call.1} parent=5 // pred_fallthru
        _
      %p269 = scmp.le.s32.totalorder 1, %s21
      %p270 = scmp.lt.s32.totalorder %s21, 5
      %p271 = pnand %p269, %p270
      %p272 = pneg %p271
      // Predicated region
      $region33: #{tpu_custom_call.1} parent=5 // pred_check
        _
      $region34: #{tpu_custom_call.1} parent=5 // pred_check_branch
        %274 = sbr.rel (%p271) target = $region36
      $region35: #{tpu_custom_call.1} parent=5 // pred_region
        %s275 = ssub.s32 %s21, 1
        // Predicated region
        $region37: #{tpu_custom_call.1} parent=35 // pred_check
          %p276 = pneg %p82
        $region38: #{tpu_custom_call.1} parent=35 // pred_check_branch
          %278 = sbr.rel (%p276) target = $region40
        $region39: #{tpu_custom_call.1} parent=35 // pred_region
          %280 = dma.done [#allocation8], 256
        $region40: #{tpu_custom_call.1} parent=35 // pred_fallthru
          _
        // Predicated region
        $region41: #{tpu_custom_call.1} parent=35 // pred_check
          %p281 = pneg %p103
        $region42: #{tpu_custom_call.1} parent=35 // pred_check_branch
          %283 = sbr.rel (%p281) target = $region44
        $region43: #{tpu_custom_call.1} parent=35 // pred_region
          %285 = dma.done [#allocation11], 512
        $region44: #{tpu_custom_call.1} parent=35 // pred_fallthru
          _
        %p286 = scmp.lt.s32.totalorder %s30, 1
        %s287 = scalar_select %p286, %s30, 1
        %p288 = scmp.lt.s32.totalorder %s31, 1
        %s289 = scalar_select %p288, %s31, 1
        %s290 = smul.addr %s287, 2
        %s291 = sadd.s32 %s289, %s290
        %s292 = smul.addr %s291, 8
        %s293 = scalar_lea.vmem %s0, %s292
        %p294 = pneg %p61
        %p295 = pneg %p58
        %p296 = pneg %p82
        %p297 = pneg %p79
        %p298 = pneg %p103
        %p299 = pneg %p100
        %p300 = pneg %p124
        %p301 = pneg %p121
        %p302 = pneg %p152
        %p303 = pneg %p149
        %s304 = sand.u32 %s139, 1
        %s305 = scalar_lea.sflag [#allocation9], %s304
        %s306 = sand.u32 %s139, 1
        %s307 = smul.addr %s306, 8
        %s308 = scalar_lea.vmem [#allocation12], %s307
        %p309 = pneg %p180
        %p310 = pneg %p177
        %s311 = sand.u32 %s167, 1
        %s312 = scalar_lea.sflag [#allocation14], %s311
        %s313 = sand.u32 %s167, 1
        %s314 = smul.addr %s313, 8
        %s315 = scalar_lea.vmem [#allocation13], %s314
        %p316 = pneg %p208
        %p317 = pneg %p205
        %p318 = scmp.lt.s32.totalorder %s30, 1
        %s319 = scalar_select %p318, %s30, 1
        %p320 = scmp.lt.s32.totalorder %s31, 1
        %s321 = scalar_select %p320, %s31, 1
        %s322 = smul.addr %s319, 2
        %s323 = sadd.s32 %s321, %s322
        %s324 = smul.addr %s323, 8
        %s325 = scalar_lea.vmem %s6, %s324
        %p326 = scmp.lt.s32.totalorder %s30, 1
        %s327 = scalar_select %p326, %s30, 1
        %p328 = scmp.lt.s32.totalorder %s31, 1
        %s329 = scalar_select %p328, %s31, 1
        %s330 = smul.addr %s327, 2
        %s331 = sadd.s32 %s329, %s330
        %s332 = smul.addr %s331, 8
        %s333 = scalar_lea.vmem %s0, %s332
        %p334 = scmp.lt.s32.totalorder %s30, 1
        %s335 = scalar_select %p334, %s30, 1
        %p336 = scmp.lt.s32.totalorder %s31, 1
        %s337 = scalar_select %p336, %s31, 1
        %s338 = smul.addr %s335, 2
        %s339 = sadd.s32 %s337, %s338
        %s340 = smul.addr %s339, 8
        %s341 = scalar_lea.vmem %s6, %s340
        %p342 = scmp.eq.s32.totalorder %s31, 0
        // Predicated region
        $region45: #{tpu_custom_call.1} parent=35 // pred_check
          %p343 = pneg %p342
        $region46: #{tpu_custom_call.1} parent=35 // pred_check_branch
          %345 = sbr.rel (%p343) target = $region48
        $region47: #{tpu_custom_call.1} parent=35 // pred_region
          %vm346 = vcmask 253952
          %347 = vst.msk [vmem:[#allocation2] sm:$0x1] %vm346, 0.0
          %348 = vst.msk [vmem:[#allocation3] sm:$0x1] %vm346, 0.0
          %349 = vst.msk [vmem:[#allocation4] sm:$0x1] %vm346, 0.0
          %vm350 = vcmask 57344
          %351 = vst.msk [vmem:[#allocation5] sm:$0x1] %vm350, 0.0
          %352 = vst.msk [vmem:[#allocation6] sm:$0x1] %vm350, 0.0
        $region48: #{tpu_custom_call.1} parent=35 // pred_fallthru
          _
        %v353 = vld [vmem:[#allocation7] sm:$0xff]
        %v354 = vld [vmem:[#allocation7 + $0x8] sm:$0xff]
        %v355 = vld [vmem:[#allocation10] sm:$0xff]
        %v356 = vld [vmem:[#allocation10 + $0x8] sm:$0xff]
        %v357 = vld [vmem:[#allocation10 + $0x10] sm:$0xff]
        %v358 = vld [vmem:[#allocation10 + $0x18] sm:$0xff]
        %v359 = vld [vmem:[%s3] sm:$0xff]
        %v360 = vld [vmem:[%s3 + $0x8] sm:$0xff]
        %v361 = vld [vmem:[%s3 + $0x10] sm:$0xff]
        %v362 = vld [vmem:[%s3 + $0x18] sm:$0xff]
        %v363 = vld [vmem:[%s333] sm:$0xff]
        %vm364 = vcmask 130048
        %v366 = vsel %vm364, %v363, 0
        %368 = vmatpush.msra.mxu0 0.0
        %369 = vmatpush.msra.mxu0 0.0
        %370 = vmatpush.msra.mxu0 0.0
        %371 = vmatpush.msra.mxu0 0.0
        %372 = vmatpush.msra.mxu0 0.0
        %373 = vmatpush.msra.mxu0 0.0
        %374 = vmatpush.msra.mxu0 0.0
        %375 = vmatpush.msra.mxu0 0.0
        %376 = vmatpush.msra.mxu0 0.0
        %377 = vmatpush.msra.mxu0 0.0
        %378 = vmatpush.msra.mxu0 0.0
        %379 = vmatpush.msra.mxu0 0.0
        %380 = vmatpush.msra.mxu0 0.0
        %381 = vmatpush.msra.mxu0 0.0
        %382 = vmatpush.msra.mxu0 %v354
        %383 = vmatpush.msra.mxu0 %v353
        %384 = vmatmul.f32.gmra.mxu0 %v366
        %v385 = vpop.f32.mrf.mxu0
        %v386 = vadd.f32 0.0, %v385
        %387 = vdwg.mxu0
        %v388 = vld [vmem:[#allocation2] sm:$0x1]
        %v389 = vld [vmem:[#allocation3] sm:$0x1]
        %v390 = vld [vmem:[#allocation4] sm:$0x1]
        %vm391 = vcmask 261120
        %v393 = vsel %vm391, %v390, 0
        %395 = vmatpush.msra.mxu0 0.0
        %396 = vmatpush.msra.mxu0 0.0
        %397 = vmatpush.msra.mxu0 0.0
        %398 = vmatpush.msra.mxu0 0.0
        %399 = vmatpush.msra.mxu0 0.0
        %400 = vmatpush.msra.mxu0 0.0
        %401 = vmatpush.msra.mxu0 0.0
        %402 = vmatpush.msra.mxu0 0.0
        %403 = vmatpush.msra.mxu0 0.0
        %404 = vmatpush.msra.mxu0 0.0
        %405 = vmatpush.msra.mxu0 0.0
        %406 = vmatpush.msra.mxu0 0.0
        %407 = vmatpush.msra.mxu0 %v358
        %408 = vmatpush.msra.mxu0 %v357
        %409 = vmatpush.msra.mxu0 %v356
        %410 = vmatpush.msra.mxu0 %v355
        %411 = vmatmul.f32.gmra.mxu0 %v393
        %v412 = vpop.f32.mrf.mxu0
        %v413 = vadd.f32 0.0, %v412
        %414 = vdwg.mxu0
        %v415 = vadd.f32 %v386, %v413
        %v416 = vsub.f32 %v389, 1.0
        %vm417 = vcmp.gt.f32.partialorder %v416, 0.0
        %v418 = vsel %vm417, 1, 0
        %v419 = vcvt.s32.f32 %v418
        %vm420 = vcmask 253952
        %421 = vst.msk [vmem:[%s308] sm:$0x1] %vm420, %v389
        %422 = vst.msk [vmem:[%s315] sm:$0x1] %vm420, %v419
        %v423 = vmul.f32 %v388, 0.8187308
        %v424 = vadd.f32 %v423, %v415
        %v425 = vmul.f32 %v389, 0.9048374
        %v426 = vadd.f32 %v425, %v388
        %v427 = vsub.f32 1.0, %v419
        %v428 = vmul.f32 %v426, %v427
        %v430 = vsel %vm391, %v419, 0
        %432 = vmatpush.msra.mxu0 0.0
        %433 = vmatpush.msra.mxu0 0.0
        %434 = vmatpush.msra.mxu0 0.0
        %435 = vmatpush.msra.mxu0 0.0
        %436 = vmatpush.msra.mxu0 0.0
        %437 = vmatpush.msra.mxu0 0.0
        %438 = vmatpush.msra.mxu0 0.0
        %439 = vmatpush.msra.mxu0 0.0
        %440 = vmatpush.msra.mxu0 0.0
        %441 = vmatpush.msra.mxu0 0.0
        %442 = vmatpush.msra.mxu0 0.0
        %443 = vmatpush.msra.mxu0 0.0
        %444 = vmatpush.msra.mxu0 %v358
        %445 = vmatpush.msra.mxu0 %v357
        %446 = vmatpush.msra.mxu0 %v356
        %447 = vmatpush.msra.mxu0 %v355
        %448 = vmatmul.f32.gmra.mxu0 %v430
        %v449 = vpop.f32.mrf.mxu0
        %v450 = vadd.f32 0.0, %v449
        %451 = vdwg.mxu0
        %v453 = vrot.slane %v450, 7
        %v455 = vadd.f32 %v386, %v453
        %v456 = vsub.f32 %v428, 1.0
        %vm457 = vcmp.gt.f32.partialorder %v456, 0.0
        %v458 = vsel %vm457, 1, 0
        %v459 = vcvt.s32.f32 %v458
        %460 = vst.msk [vmem:[%s308 + $0x1] sm:$0x1] %vm420, %v428
        %461 = vst.msk [vmem:[%s315 + $0x1] sm:$0x1] %vm420, %v459
        %v462 = vmul.f32 %v424, 0.8187308
        %464 = vst [vmem:[#allocation1] sm:$0xff] %v455
        %s465 = scalar_lea.vmem [#allocation1], 1
        %v466 = vld [vmem:[%s465] ss:$9 sm:$0xff]
        %v468 = vadd.f32 %v462, %v466
        %v469 = vmul.f32 %v428, 0.9048374
        %v470 = vadd.f32 %v469, %v424
        %v471 = vsub.f32 1.0, %v459
        %v472 = vmul.f32 %v470, %v471
        %v474 = vsel %vm391, %v459, 0
        %476 = vmatpush.msra.mxu0 0.0
        %477 = vmatpush.msra.mxu0 0.0
        %478 = vmatpush.msra.mxu0 0.0
        %479 = vmatpush.msra.mxu0 0.0
        %480 = vmatpush.msra.mxu0 0.0
        %481 = vmatpush.msra.mxu0 0.0
        %482 = vmatpush.msra.mxu0 0.0
        %483 = vmatpush.msra.mxu0 0.0
        %484 = vmatpush.msra.mxu0 0.0
        %485 = vmatpush.msra.mxu0 0.0
        %486 = vmatpush.msra.mxu0 0.0
        %487 = vmatpush.msra.mxu0 0.0
        %488 = vmatpush.msra.mxu0 %v358
        %489 = vmatpush.msra.mxu0 %v357
        %490 = vmatpush.msra.mxu0 %v356
        %491 = vmatpush.msra.mxu0 %v355
        %492 = vmatmul.f32.gmra.mxu0 %v474
        %v493 = vpop.f32.mrf.mxu0
        %v494 = vadd.f32 0.0, %v493
        %495 = vdwg.mxu0
        %v497 = vrot.slane %v494, 6
        %v499 = vadd.f32 %v386, %v497
        %v500 = vsub.f32 %v472, 1.0
        %vm501 = vcmp.gt.f32.partialorder %v500, 0.0
        %v502 = vsel %vm501, 1, 0
        %v503 = vcvt.s32.f32 %v502
        %504 = vst.msk [vmem:[%s308 + $0x2] sm:$0x1] %vm420, %v472
        %505 = vst.msk [vmem:[%s315 + $0x2] sm:$0x1] %vm420, %v503
        %v506 = vmul.f32 %v468, 0.8187308
        %508 = vst [vmem:[#allocation1] sm:$0xff] %v499
        %s509 = scalar_lea.vmem [#allocation1], 2
        %v510 = vld [vmem:[%s509] ss:$9 sm:$0xff]
        %v512 = vadd.f32 %v506, %v510
        %v513 = vmul.f32 %v472, 0.9048374
        %v514 = vadd.f32 %v513, %v468
        %v515 = vsub.f32 1.0, %v503
        %v516 = vmul.f32 %v514, %v515
        %v518 = vsel %vm391, %v503, 0
        %520 = vmatpush.msra.mxu0 0.0
        %521 = vmatpush.msra.mxu0 0.0
        %522 = vmatpush.msra.mxu0 0.0
        %523 = vmatpush.msra.mxu0 0.0
        %524 = vmatpush.msra.mxu0 0.0
        %525 = vmatpush.msra.mxu0 0.0
        %526 = vmatpush.msra.mxu0 0.0
        %527 = vmatpush.msra.mxu0 0.0
        %528 = vmatpush.msra.mxu0 0.0
        %529 = vmatpush.msra.mxu0 0.0
        %530 = vmatpush.msra.mxu0 0.0
        %531 = vmatpush.msra.mxu0 0.0
        %532 = vmatpush.msra.mxu0 %v358
        %533 = vmatpush.msra.mxu0 %v357
        %534 = vmatpush.msra.mxu0 %v356
        %535 = vmatpush.msra.mxu0 %v355
        %536 = vmatmul.f32.gmra.mxu0 %v518
        %v537 = vpop.f32.mrf.mxu0
        %v538 = vadd.f32 0.0, %v537
        %539 = vdwg.mxu0
        %v541 = vrot.slane %v538, 5
        %v543 = vadd.f32 %v386, %v541
        %v544 = vsub.f32 %v516, 1.0
        %vm545 = vcmp.gt.f32.partialorder %v544, 0.0
        %v546 = vsel %vm545, 1, 0
        %v547 = vcvt.s32.f32 %v546
        %548 = vst.msk [vmem:[%s308 + $0x3] sm:$0x1] %vm420, %v516
        %549 = vst.msk [vmem:[%s315 + $0x3] sm:$0x1] %vm420, %v547
        %v550 = vmul.f32 %v512, 0.8187308
        %552 = vst [vmem:[#allocation1] sm:$0xff] %v543
        %s553 = scalar_lea.vmem [#allocation1], 3
        %v554 = vld [vmem:[%s553] ss:$9 sm:$0xff]
        %v556 = vadd.f32 %v550, %v554
        %v557 = vmul.f32 %v516, 0.9048374
        %v558 = vadd.f32 %v557, %v512
        %v559 = vsub.f32 1.0, %v547
        %v560 = vmul.f32 %v558, %v559
        %v562 = vsel %vm391, %v547, 0
        %564 = vmatpush.msra.mxu0 0.0
        %565 = vmatpush.msra.mxu0 0.0
        %566 = vmatpush.msra.mxu0 0.0
        %567 = vmatpush.msra.mxu0 0.0
        %568 = vmatpush.msra.mxu0 0.0
        %569 = vmatpush.msra.mxu0 0.0
        %570 = vmatpush.msra.mxu0 0.0
        %571 = vmatpush.msra.mxu0 0.0
        %572 = vmatpush.msra.mxu0 0.0
        %573 = vmatpush.msra.mxu0 0.0
        %574 = vmatpush.msra.mxu0 0.0
        %575 = vmatpush.msra.mxu0 0.0
        %576 = vmatpush.msra.mxu0 %v358
        %577 = vmatpush.msra.mxu0 %v357
        %578 = vmatpush.msra.mxu0 %v356
        %579 = vmatpush.msra.mxu0 %v355
        %580 = vmatmul.f32.gmra.mxu0 %v562
        %v581 = vpop.f32.mrf.mxu0
        %v582 = vadd.f32 0.0, %v581
        %583 = vdwg.mxu0
        %v585 = vrot.slane %v582, 4
        %v587 = vadd.f32 %v386, %v585
        %v588 = vsub.f32 %v560, 1.0
        %vm589 = vcmp.gt.f32.partialorder %v588, 0.0
        %v590 = vsel %vm589, 1, 0
        %v591 = vcvt.s32.f32 %v590
        %592 = vst.msk [vmem:[%s308 + $0x4] sm:$0x1] %vm420, %v560
        %593 = vst.msk [vmem:[%s315 + $0x4] sm:$0x1] %vm420, %v591
        %v594 = vmul.f32 %v556, 0.8187308
        %596 = vst [vmem:[#allocation1] sm:$0xff] %v587
        %s597 = scalar_lea.vmem [#allocation1], 4
        %v598 = vld [vmem:[%s597] ss:$9 sm:$0xff]
        %v600 = vadd.f32 %v594, %v598
        %v601 = vmul.f32 %v560, 0.9048374
        %v602 = vadd.f32 %v601, %v556
        %v603 = vsub.f32 1.0, %v591
        %v604 = vmul.f32 %v602, %v603
        %v606 = vsel %vm391, %v591, 0
        %608 = vmatpush.msra.mxu0 0.0
        %609 = vmatpush.msra.mxu0 0.0
        %610 = vmatpush.msra.mxu0 0.0
        %611 = vmatpush.msra.mxu0 0.0
        %612 = vmatpush.msra.mxu0 0.0
        %613 = vmatpush.msra.mxu0 0.0
        %614 = vmatpush.msra.mxu0 0.0
        %615 = vmatpush.msra.mxu0 0.0
        %616 = vmatpush.msra.mxu0 0.0
        %617 = vmatpush.msra.mxu0 0.0
        %618 = vmatpush.msra.mxu0 0.0
        %619 = vmatpush.msra.mxu0 0.0
        %620 = vmatpush.msra.mxu0 %v358
        %621 = vmatpush.msra.mxu0 %v357
        %622 = vmatpush.msra.mxu0 %v356
        %623 = vmatpush.msra.mxu0 %v355
        %624 = vmatmul.f32.gmra.mxu0 %v606
        %v625 = vpop.f32.mrf.mxu0
        %v626 = vadd.f32 0.0, %v625
        %627 = vdwg.mxu0
        %v629 = vrot.slane %v626, 3
        %v631 = vadd.f32 %v386, %v629
        %v632 = vsub.f32 %v604, 1.0
        %vm633 = vcmp.gt.f32.partialorder %v632, 0.0
        %v634 = vsel %vm633, 1, 0
        %v635 = vcvt.s32.f32 %v634
        %636 = vst.msk [vmem:[%s308 + $0x5] sm:$0x1] %vm420, %v604
        %637 = vst.msk [vmem:[%s315 + $0x5] sm:$0x1] %vm420, %v635
        %v638 = vmul.f32 %v600, 0.8187308
        %640 = vst [vmem:[#allocation1] sm:$0xff] %v631
        %s641 = scalar_lea.vmem [#allocation1], 5
        %v642 = vld [vmem:[%s641] ss:$9 sm:$0xff]
        %v644 = vadd.f32 %v638, %v642
        %v645 = vmul.f32 %v604, 0.9048374
        %v646 = vadd.f32 %v645, %v600
        %v647 = vsub.f32 1.0, %v635
        %v648 = vmul.f32 %v646, %v647
        %v650 = vsel %vm391, %v635, 0
        %652 = vmatpush.msra.mxu0 0.0
        %653 = vmatpush.msra.mxu0 0.0
        %654 = vmatpush.msra.mxu0 0.0
        %655 = vmatpush.msra.mxu0 0.0
        %656 = vmatpush.msra.mxu0 0.0
        %657 = vmatpush.msra.mxu0 0.0
        %658 = vmatpush.msra.mxu0 0.0
        %659 = vmatpush.msra.mxu0 0.0
        %660 = vmatpush.msra.mxu0 0.0
        %661 = vmatpush.msra.mxu0 0.0
        %662 = vmatpush.msra.mxu0 0.0
        %663 = vmatpush.msra.mxu0 0.0
        %664 = vmatpush.msra.mxu0 %v358
        %665 = vmatpush.msra.mxu0 %v357
        %666 = vmatpush.msra.mxu0 %v356
        %667 = vmatpush.msra.mxu0 %v355
        %668 = vmatmul.f32.gmra.mxu0 %v650
        %v669 = vpop.f32.mrf.mxu0
        %v670 = vadd.f32 0.0, %v669
        %671 = vdwg.mxu0
        %v673 = vrot.slane %v670, 2
        %v675 = vadd.f32 %v386, %v673
        %v676 = vsub.f32 %v648, 1.0
        %vm677 = vcmp.gt.f32.partialorder %v676, 0.0
        %v678 = vsel %vm677, 1, 0
        %v679 = vcvt.s32.f32 %v678
        %680 = vst.msk [vmem:[%s308 + $0x6] sm:$0x1] %vm420, %v648
        %681 = vst.msk [vmem:[%s315 + $0x6] sm:$0x1] %vm420, %v679
        %v682 = vmul.f32 %v644, 0.8187308
        %684 = vst [vmem:[#allocation1] sm:$0xff] %v675
        %s685 = scalar_lea.vmem [#allocation1], 6
        %v686 = vld [vmem:[%s685] ss:$9 sm:$0xff]
        %v688 = vadd.f32 %v682, %v686
        %v689 = vmul.f32 %v648, 0.9048374
        %v690 = vadd.f32 %v689, %v644
        %v691 = vsub.f32 1.0, %v679
        %v692 = vmul.f32 %v690, %v691
        %v694 = vsel %vm391, %v679, 0
        %696 = vmatpush.msra.mxu0 0.0
        %697 = vmatpush.msra.mxu0 0.0
        %698 = vmatpush.msra.mxu0 0.0
        %699 = vmatpush.msra.mxu0 0.0
        %700 = vmatpush.msra.mxu0 0.0
        %701 = vmatpush.msra.mxu0 0.0
        %702 = vmatpush.msra.mxu0 0.0
        %703 = vmatpush.msra.mxu0 0.0
        %704 = vmatpush.msra.mxu0 0.0
        %705 = vmatpush.msra.mxu0 0.0
        %706 = vmatpush.msra.mxu0 0.0
        %707 = vmatpush.msra.mxu0 0.0
        %708 = vmatpush.msra.mxu0 %v358
        %709 = vmatpush.msra.mxu0 %v357
        %710 = vmatpush.msra.mxu0 %v356
        %711 = vmatpush.msra.mxu0 %v355
        %712 = vmatmul.f32.gmra.mxu0 %v694
        %v713 = vpop.f32.mrf.mxu0
        %v714 = vadd.f32 0.0, %v713
        %715 = vdwg.mxu0
        %v717 = vrot.slane %v714, 1
        %v719 = vadd.f32 %v386, %v717
        %v720 = vsub.f32 %v692, 1.0
        %vm721 = vcmp.gt.f32.partialorder %v720, 0.0
        %v722 = vsel %vm721, 1, 0
        %v723 = vcvt.s32.f32 %v722
        %724 = vst.msk [vmem:[%s308 + $0x7] sm:$0x1] %vm420, %v692
        %725 = vst.msk [vmem:[%s315 + $0x7] sm:$0x1] %vm420, %v723
        %v726 = vmul.f32 %v688, 0.8187308
        %728 = vst [vmem:[#allocation1] sm:$0xff] %v719
        %s729 = scalar_lea.vmem [#allocation1], 7
        %v730 = vld [vmem:[%s729] ss:$9 sm:$0xff]
        %v732 = vadd.f32 %v726, %v730
        %v733 = vmul.f32 %v692, 0.9048374
        %v734 = vadd.f32 %v733, %v688
        %v735 = vsub.f32 1.0, %v723
        %v736 = vmul.f32 %v734, %v735
        %737 = vst.msk [vmem:[#allocation2] sm:$0x1] %vm420, %v732
        %738 = vst.msk [vmem:[#allocation3] sm:$0x1] %vm420, %v736
        %739 = vst.msk [vmem:[#allocation4] sm:$0x1] %vm420, %v723
        %v740 = vld [vmem:[%s315] sm:$0xff]
        %v742 = vsel %vm391, %v740, 0
        %744 = vmatpush.msra.mxu0 0.0
        %745 = vmatpush.msra.mxu0 0.0
        %746 = vmatpush.msra.mxu0 0.0
        %747 = vmatpush.msra.mxu0 0.0
        %748 = vmatpush.msra.mxu0 0.0
        %749 = vmatpush.msra.mxu0 0.0
        %750 = vmatpush.msra.mxu0 0.0
        %751 = vmatpush.msra.mxu0 0.0
        %752 = vmatpush.msra.mxu0 0.0
        %753 = vmatpush.msra.mxu0 0.0
        %754 = vmatpush.msra.mxu0 0.0
        %755 = vmatpush.msra.mxu0 0.0
        %756 = vmatpush.msra.mxu0 %v362
        %757 = vmatpush.msra.mxu0 %v361
        %758 = vmatpush.msra.mxu0 %v360
        %759 = vmatpush.msra.mxu0 %v359
        %760 = vmatmul.f32.gmra.mxu0 %v742
        %v761 = vpop.f32.mrf.mxu0
        %v762 = vadd.f32 0.0, %v761
        %763 = vdwg.mxu0
        %v764 = vld [vmem:[#allocation5] sm:$0x1]
        %v765 = vld [vmem:[#allocation6] sm:$0x1]
        %v766 = vmul.f32 %v764, 0.8187308
        %v767 = vadd.f32 %v766, %v762
        %v768 = vmul.f32 %v765, 0.9048374
        %v769 = vadd.f32 %v768, %v764
        %vm770 = vcmask 57344
        %771 = vst.msk [vmem:[%s341] sm:$0x1] %vm770, %v769
        %v772 = vmul.f32 %v767, 0.8187308
        %774 = vst [vmem:[#allocation1] sm:$0xff] %v762
        %s775 = scalar_lea.vmem [#allocation1], 1
        %v776 = vld [vmem:[%s775] ss:$9 sm:$0xff]
        %v778 = vadd.f32 %v772, %v776
        %v779 = vmul.f32 %v769, 0.9048374
        %v780 = vadd.f32 %v779, %v767
        %781 = vst.msk [vmem:[%s341 + $0x1] sm:$0x1] %vm770, %v780
        %v782 = vmul.f32 %v778, 0.8187308
        %783 = vst [vmem:[#allocation1] sm:$0xff] %v762
        %s784 = scalar_lea.vmem [#allocation1], 2
        %v785 = vld [vmem:[%s784] ss:$9 sm:$0xff]
        %v787 = vadd.f32 %v782, %v785
        %v788 = vmul.f32 %v780, 0.9048374
        %v789 = vadd.f32 %v788, %v778
        %790 = vst.msk [vmem:[%s341 + $0x2] sm:$0x1] %vm770, %v789
        %v791 = vmul.f32 %v787, 0.8187308
        %792 = vst [vmem:[#allocation1] sm:$0xff] %v762
        %s793 = scalar_lea.vmem [#allocation1], 3
        %v794 = vld [vmem:[%s793] ss:$9 sm:$0xff]
        %v796 = vadd.f32 %v791, %v794
        %v797 = vmul.f32 %v789, 0.9048374
        %v798 = vadd.f32 %v797, %v787
        %799 = vst.msk [vmem:[%s341 + $0x3] sm:$0x1] %vm770, %v798
        %v800 = vmul.f32 %v796, 0.8187308
        %801 = vst [vmem:[#allocation1] sm:$0xff] %v762
        %s802 = scalar_lea.vmem [#allocation1], 4
        %v803 = vld [vmem:[%s802] ss:$9 sm:$0xff]
        %v805 = vadd.f32 %v800, %v803
        %v806 = vmul.f32 %v798, 0.9048374
        %v807 = vadd.f32 %v806, %v796
        %808 = vst.msk [vmem:[%s341 + $0x4] sm:$0x1] %vm770, %v807
        %v809 = vmul.f32 %v805, 0.8187308
        %810 = vst [vmem:[#allocation1] sm:$0xff] %v762
        %s811 = scalar_lea.vmem [#allocation1], 5
        %v812 = vld [vmem:[%s811] ss:$9 sm:$0xff]
        %v814 = vadd.f32 %v809, %v812
        %v815 = vmul.f32 %v807, 0.9048374
        %v816 = vadd.f32 %v815, %v805
        %817 = vst.msk [vmem:[%s341 + $0x5] sm:$0x1] %vm770, %v816
        %v818 = vmul.f32 %v814, 0.8187308
        %819 = vst [vmem:[#allocation1] sm:$0xff] %v762
        %s820 = scalar_lea.vmem [#allocation1], 6
        %v821 = vld [vmem:[%s820] ss:$9 sm:$0xff]
        %v823 = vadd.f32 %v818, %v821
        %v824 = vmul.f32 %v816, 0.9048374
        %v825 = vadd.f32 %v824, %v814
        %826 = vst.msk [vmem:[%s341 + $0x6] sm:$0x1] %vm770, %v825
        %v827 = vmul.f32 %v823, 0.8187308
        %828 = vst [vmem:[#allocation1] sm:$0xff] %v762
        %s829 = scalar_lea.vmem [#allocation1], 7
        %v830 = vld [vmem:[%s829] ss:$9 sm:$0xff]
        %v832 = vadd.f32 %v827, %v830
        %v833 = vmul.f32 %v825, 0.9048374
        %v834 = vadd.f32 %v833, %v823
        %835 = vst.msk [vmem:[%s341 + $0x7] sm:$0x1] %vm770, %v834
        %836 = vst.msk [vmem:[#allocation5] sm:$0x1] %vm770, %v832
        %837 = vst.msk [vmem:[#allocation6] sm:$0x1] %vm770, %v834
        %s838 = sand.u32 %s139, 1
        %s839 = scalar_lea.sflag [#allocation9], %s838
        %s840 = sand.u32 %s139, 1
        %s841 = smul.addr %s840, 8
        %s842 = scalar_lea.vmem [#allocation12], %s841
        %s843 = sand.u32 %s167, 1
        %s844 = scalar_lea.sflag [#allocation14], %s843
        %s845 = sand.u32 %s167, 1
        %s846 = smul.addr %s845, 8
        %s847 = scalar_lea.vmem [#allocation13], %s846
        %p848 = scmp.lt.s32.totalorder %s30, 1
        %s849 = scalar_select %p848, %s30, 1
        %p850 = scmp.lt.s32.totalorder %s31, 1
        %s851 = scalar_select %p850, %s31, 1
        %s852 = smul.addr %s849, 2
        %s853 = sadd.s32 %s851, %s852
        %s854 = smul.addr %s853, 8
        %s855 = scalar_lea.vmem %s6, %s854
        // Predicated region
        $region49: #{tpu_custom_call.1} parent=35 // pred_check
          %p856 = pneg %p149
        $region50: #{tpu_custom_call.1} parent=35 // pred_check_branch
          %858 = sbr.rel (%p856) target = $region52
        $region51: #{tpu_custom_call.1} parent=35 // pred_region
          %860 = vsyncadd %s839, 0
          %s861 = smul.addr %s30, 2
          %s862 = sadd.s32 %s31, %s861
          %s863 = smul.addr %s862, 8
          %s864 = scalar_lea.hbm %s4, %s863
          %s866 = sshll.u32 %s842, 4
          %s867 = int_to_ptr.vmem [resolvable:$true] %s866
          %s868 = sshll.u32 %s864, 4
          %s869 = int_to_ptr.hbm [resolvable:$true] %s868
          %871 = dma.vmem_to_hbm [thread:$0]  %s867, 128, %s869, %s839
        $region52: #{tpu_custom_call.1} parent=35 // pred_fallthru
          _
        // Predicated region
        $region53: #{tpu_custom_call.1} parent=35 // pred_check
          %p872 = pneg %p177
        $region54: #{tpu_custom_call.1} parent=35 // pred_check_branch
          %874 = sbr.rel (%p872) target = $region56
        $region55: #{tpu_custom_call.1} parent=35 // pred_region
          %876 = vsyncadd %s844, 0
          %s877 = smul.addr %s30, 2
          %s878 = sadd.s32 %s31, %s877
          %s879 = smul.addr %s878, 8
          %s880 = scalar_lea.hbm %s5, %s879
          %s882 = sshll.u32 %s847, 4
          %s883 = int_to_ptr.vmem [resolvable:$true] %s882
          %s884 = sshll.u32 %s880, 4
          %s885 = int_to_ptr.hbm [resolvable:$true] %s884
          %887 = dma.vmem_to_hbm [thread:$0]  %s883, 128, %s885, %s844
        $region56: #{tpu_custom_call.1} parent=35 // pred_fallthru
          _
        // Predicated region
        $region57: #{tpu_custom_call.1} parent=35 // pred_check
          %p888 = pneg %p205
        $region58: #{tpu_custom_call.1} parent=35 // pred_check_branch
          %890 = sbr.rel (%p888) target = $region60
        $region59: #{tpu_custom_call.1} parent=35 // pred_region
          _
        $region60: #{tpu_custom_call.1} parent=35 // pred_fallthru
          _
      $region36: #{tpu_custom_call.1} parent=5 // pred_fallthru
        _
      %p891 = scmp.le.s32.totalorder 2, %s21
      // Predicated region
      $region61: #{tpu_custom_call.1} parent=5 // pred_check
        %p892 = pneg %p891
      $region62: #{tpu_custom_call.1} parent=5 // pred_check_branch
        %894 = sbr.rel (%p892) target = $region64
      $region63: #{tpu_custom_call.1} parent=5 // pred_region
        %s895 = ssub.s32 %s21, 2
        // Predicated region
        $region65: #{tpu_custom_call.1} parent=63 // pred_check
          %p896 = pneg %p155
        $region66: #{tpu_custom_call.1} parent=63 // pred_check_branch
          %898 = sbr.rel (%p896) target = $region68
        $region67: #{tpu_custom_call.1} parent=63 // pred_region
          %s899 = sand.u32 %s140, 1
          %s900 = scalar_lea.sflag [#allocation9], %s899
          %s901 = sand.u32 %s140, 1
          %s902 = smul.addr %s901, 8
          %s903 = scalar_lea.vmem [#allocation12], %s902
          %905 = dma.done %s900, 128
        $region68: #{tpu_custom_call.1} parent=63 // pred_fallthru
          _
        // Predicated region
        $region69: #{tpu_custom_call.1} parent=63 // pred_check
          %p906 = pneg %p183
        $region70: #{tpu_custom_call.1} parent=63 // pred_check_branch
          %908 = sbr.rel (%p906) target = $region72
        $region71: #{tpu_custom_call.1} parent=63 // pred_region
          %s909 = sand.u32 %s168, 1
          %s910 = scalar_lea.sflag [#allocation14], %s909
          %s911 = sand.u32 %s168, 1
          %s912 = smul.addr %s911, 8
          %s913 = scalar_lea.vmem [#allocation13], %s912
          %915 = dma.done %s910, 128
        $region72: #{tpu_custom_call.1} parent=63 // pred_fallthru
          _
        // Predicated region
        $region73: #{tpu_custom_call.1} parent=63 // pred_check
          %p916 = pneg %p211
        $region74: #{tpu_custom_call.1} parent=63 // pred_check_branch
          %918 = sbr.rel (%p916) target = $region76
        $region75: #{tpu_custom_call.1} parent=63 // pred_region
          %p919 = scmp.lt.s32.totalorder %s32, 1
          %s920 = scalar_select %p919, %s32, 1
          %p921 = scmp.lt.s32.totalorder %s33, 1
          %s922 = scalar_select %p921, %s33, 1
          %s923 = smul.addr %s920, 2
          %s924 = sadd.s32 %s922, %s923
          %s925 = smul.addr %s924, 8
          %s926 = scalar_lea.vmem %s6, %s925
        $region76: #{tpu_custom_call.1} parent=63 // pred_fallthru
          _
      $region64: #{tpu_custom_call.1} parent=5 // pred_fallthru
        _
    $region6: #{tpu_custom_call.1} parent=1 // loop_footer
      %s25 = sadd.s32 1, %s21
    $region7: #{tpu_custom_call.1} parent=1 // loop_footer_branch
      %20 = sbr.rel target = $region3
    $region8: #{tpu_custom_call.1} parent=1 // loop_exit
      _
    %927 = vsyncpa [#allocation8], 1
    %s928 = scalar_lea.sflag [#allocation8], 1
    %929 = vsyncpa %s928, 1
    %930 = vsyncpa [#allocation11], 1
    %931 = vsyncpa [#allocation9], 1
    %s932 = scalar_lea.sflag [#allocation9], 1
    %933 = vsyncpa %s932, 1
    %934 = vsyncpa [#allocation14], 1
    %s935 = scalar_lea.sflag [#allocation14], 1
    %936 = vsyncpa %s935, 1

</llo_original>
